<compile_context>
chip_gen: v7x
topology: tpu7x:2x2x1
jax: 0.10.0
libtpu: 0.0.40
codegen_flags: <defaults>
</compile_context>

<pallas_src>
import math

import jax
import jax.numpy as jnp
from jax import lax
from jax.experimental import pallas as pl
from jax.experimental.pallas import tpu as pltpu


def _make_kernel(Bt, S, D, E_pad, A, H):
    inv_sqrt2 = 1.0 / math.sqrt(2.0)
    f32 = jnp.float32
    G = Bt * E_pad            # stacked entity rows
    N = Bt * E_pad * A        # stacked (batch, entity, arg-role) rows

    def kernel(sent_ref, arg_raw_ref, arg_wT_ref, em_ext_ref, t2t_ref,
               wta_ref, bta_ref, w1e_ref, w1a_ref, b1_ref, w2T_ref, b2_ref,
               out_ref):
        def bmm(a, b):      # (Bt, m, k) @ (Bt, k, n)
            return lax.dot_general(a, b, (((2,), (1,)), ((0,), (0,))),
                                   preferred_element_type=f32)

        def bmm_nt(a, b):   # (Bt, m, k) @ (Bt, n, k)^T
            return lax.dot_general(a, b, (((2,), (2,)), ((0,), (0,))),
                                   preferred_element_type=f32)

        def mm(a, b):       # plain 2-D a @ b
            return lax.dot_general(a, b, (((1,), (0,)), ((), ())),
                                   preferred_element_type=f32)

        sent = sent_ref[...]            # (Bt, S, D)
        arg_raw = arg_raw_ref[...]      # (Bt, A, D)
        arg_wT = arg_wT_ref[...]        # (Bt, A, A)   pre-transposed arg weights
        em_ext = em_ext_ref[...]        # (Bt, E_pad+1, S) entity map + trig row
        t2t = t2t_ref[...]              # (Bt, S, S)   token2token attention

        em_pad = em_ext[:, :E_pad, :]                         # (Bt, E_pad, S)

        # One batched dot gives entity rows and the trigger embedding together.
        ent_trig = bmm(em_ext, sent)                          # (Bt, E_pad+1, D)
        ent_raw = ent_trig[:, :E_pad, :]                      # (Bt, E_pad, D)
        trig = ent_trig[:, E_pad:E_pad + 1, :]                # (Bt, 1, D)
        trig_b = jnp.broadcast_to(trig, (Bt, E_pad, D))

        # non-empty entity mask (empty slot <=> all-zero mapping row)
        non_empty = (jnp.sum(jnp.abs(em_pad), axis=-1, keepdims=True)
                     > 0.0).astype(f32)                       # (Bt, E_pad, 1)

        # argument embeddings combined by arg_weight_matrices
        arg = bmm(arg_wT, arg_raw)                            # (Bt, A, D)

        # trigger-aware entity: Linear(3D -> D), one wide-K dot, batch in M
        cat = jnp.concatenate([ent_raw, trig_b, ent_raw * trig_b], axis=-1)
        ent_ta = mm(cat.reshape(G, 3 * D), wta_ref[...]) + bta_ref[...]
        ent_ta = ent_ta.reshape(Bt, E_pad, D) * non_empty     # (Bt, E_pad, D)

        # bilinear scores + L1 normalisation (F.normalize p=1); the 1/sqrt(D)
        # scale of the original cancels in the normalisation and is dropped.
        s_ea = bmm_nt(ent_ta, arg)                            # (Bt, E_pad, A)
        s_ae = bmm_nt(arg, ent_ta)                            # (Bt, A, E_pad)
        t2a = s_ea / jnp.maximum(
            jnp.sum(jnp.abs(s_ea), axis=-1, keepdims=True), 1e-12)
        a2t = s_ae / jnp.maximum(
            jnp.sum(jnp.abs(s_ae), axis=-1, keepdims=True), 1e-12)
        tok_argA = bmm(t2a, arg)                              # (Bt, E_pad, D)
        arg_tokA = bmm(a2t, ent_ta)                           # (Bt, A, D)

        # A_h2h projected onto entities, re-associated as (em @ t2t) @ sent
        h2h_ent = bmm(bmm(em_pad, t2t), sent)                 # (Bt, E_pad, D)

        # arg2arg softmax attention
        aa = bmm_nt(arg, arg)                                 # (Bt, A, A)
        aa = jnp.exp(aa - jnp.max(aa, axis=-1, keepdims=True))
        u2u = bmm(aa / jnp.sum(aa, axis=-1, keepdims=True), arg)

        # Final MLP over latent = [H_, U_, A_h2u, A_h2h, A_u2h, A_u2u]:
        # the 6D -> H projection is split into an entity-side and an arg-side
        # wide-K (3D) dot with the batch stacked into M.
        ent_feat = jnp.concatenate([ent_raw, tok_argA, h2h_ent], axis=-1)
        arg_feat = jnp.concatenate([arg, arg_tokA, u2u], axis=-1)
        ent_part = mm(ent_feat.reshape(G, 3 * D), w1e_ref[...])        # (G, H)
        arg_part = mm(arg_feat.reshape(Bt * A, 3 * D), w1a_ref[...])   # (Bt*A,H)

        # Expand to the (b, e, a) row grid in one shot:
        #  - entity rows repeated A times each via a constant 0/1 MXU matmul
        #  - argument rows tiled along the entity axis via a major-dim broadcast
        ri = lax.broadcasted_iota(jnp.int32, (N, G), 0)
        cj = lax.broadcasted_iota(jnp.int32, (N, G), 1)
        rep = jnp.logical_and(ri >= cj * A, ri < (cj + 1) * A).astype(f32)
        ent_rep = mm(rep, ent_part)                                    # (N, H)
        arg_rep = jnp.broadcast_to(arg_part.reshape(Bt, 1, A, H),
                                   (Bt, E_pad, A, H)).reshape(N, H)

        hidden = ent_rep + arg_rep + b1_ref[...]                       # (N, H)
        # exact GELU (erf form), matching torch.nn.GELU()
        act = 0.5 * hidden * (1.0 + lax.erf(hidden * inv_sqrt2))
        # lane-dense output row: (1, H) @ (N, H)^T -> (1, N)
        out_row = lax.dot_general(w2T_ref[...], act, (((1,), (1,)), ((), ())),
                                  preferred_element_type=f32) + b2_ref[...]
        out_ref[0] = out_row

    return kernel


def earl_score_pallas(sent, arg_raw, arg_wT, ent_mapT, is_trig, t2t, params,
                      *, bt=None):
    B, S, D = sent.shape
    A = arg_raw.shape[1]
    E = ent_mapT.shape[1]
    H = params["b1"].shape[1]
    E_pad = ((E + 7) // 8) * 8
    if bt is None:
        bt = B if B <= 8 else 8
    assert B % bt == 0, "batch tile must divide batch"
    nb = B // bt
    f32 = jnp.float32

    # --- wrapper-side prep (tiny XLA ops, done once per call) ---------------
    # Pad the entity axis to a multiple of 8 and append the trigger-averaging
    # row so a single batched dot yields both entity and trigger embeddings.
    em_pad = jnp.pad(ent_mapT, ((0, 0), (0, E_pad - E), (0, 0)))
    # NOTE: like the PyTorch module, an example with no trigger tokens would
    # divide by zero here.
    trig_row = (is_trig / jnp.sum(is_trig, axis=1, keepdims=True))[:, None, :]
    em_ext = jnp.concatenate([em_pad, trig_row], axis=1)   # (B, E_pad+1, S)

    # Re-pack the 6D->H weight into entity-side / arg-side 3D->H halves and
    # pre-transpose the H->1 weight so the kernel writes a lane-dense row.
    w1 = params["w1_t"]
    w1e = jnp.concatenate([w1[0:D], w1[2 * D:3 * D], w1[3 * D:4 * D]], axis=0)
    w1a = jnp.concatenate([w1[D:2 * D], w1[4 * D:5 * D], w1[5 * D:6 * D]],
                          axis=0)
    w2T = params["w2_t"].T                                  # (1, H)

    kernel = _make_kernel(bt, S, D, E_pad, A, H)
    N = bt * E_pad * A
    bmap = lambda b: (b, 0, 0)
    wmap = lambda b: (0, 0)

    out = pl.pallas_call(
        kernel,
        out_shape=jax.ShapeDtypeStruct((nb, 1, N), f32),
        grid=(nb,),
        in_specs=[
            pl.BlockSpec((bt, S, D), bmap),
            pl.BlockSpec((bt, A, D), bmap),
            pl.BlockSpec((bt, A, A), bmap),
            pl.BlockSpec((bt, E_pad + 1, S), bmap),
            pl.BlockSpec((bt, S, S), bmap),
            pl.BlockSpec((3 * D, D), wmap),
            pl.BlockSpec((1, D), wmap),
            pl.BlockSpec((3 * D, H), wmap),
            pl.BlockSpec((3 * D, H), wmap),
            pl.BlockSpec((1, H), wmap),
            pl.BlockSpec((1, H), wmap),
            pl.BlockSpec((1, 1), wmap),
        ],
        out_specs=pl.BlockSpec((1, 1, N), bmap),
        compiler_params=pltpu.CompilerParams(
            dimension_semantics=("parallel",)),
    )(sent, arg_raw, arg_wT, em_ext, t2t,
      params["wta_t"], params["bta"], w1e, w1a, params["b1"], w2T,
      params["b2"])

    # free, contiguous reinterpretation; drop the padded entity rows
    return out.reshape(B, E_pad, A)[:, :E, :]


# ----------------------------- plain-JAX glue ------------------------------ #

def map_arg_to_ids_jax(score, arg_mapping, arg_roles):
    """Scatter kernel scores back to their global arg-role ids (-1e6 fill)."""
    B, E, A = score.shape
    d = arg_roles + 1
    tgt = jnp.where(arg_mapping < d, arg_mapping, d).astype(jnp.int32)

    def per_example(sc, t):
        new = jnp.full((E, d + 1), -1.0e6, dtype=jnp.float32)
        new = new.at[:, t].set(sc)
        return new[:, :d]

    return jax.vmap(per_example)(score, tgt)


def weighted_cross_entropy(logits, targets, class_weights, ignore_index):
    valid = targets != ignore_index
    safe_t = jnp.where(valid, targets, 0)
    logp = jax.nn.log_softmax(logits, axis=-1)
    picked = jnp.take_along_axis(logp, safe_t[:, None], axis=1)[:, 0]
    w = class_weights[safe_t] * valid.astype(jnp.float32)
    return -jnp.sum(w * picked) / jnp.sum(w)


def reference_score(sent, arg_raw, arg_w, ent_map, is_trig, t2t, params):
    """Pure-JAX mirror of the PyTorch math, used to validate the kernel."""
    B, S, D = sent.shape
    sqrt_d = math.sqrt(D)
    ent_raw = jnp.einsum("bsd,bse->bed", sent, ent_map)
    trig = (jnp.sum(sent * is_trig[..., None], axis=1) /
            jnp.sum(is_trig, axis=1, keepdims=True))
    arg = jnp.einsum("brd,bra->bad", arg_raw, arg_w)
    E_, A_ = ent_raw.shape[1], arg.shape[1]
    trig_b = jnp.broadcast_to(trig[:, None, :], ent_raw.shape)
    cat = jnp.concatenate([ent_raw, trig_b, ent_raw * trig_b], axis=-1)
    ent_ta = cat @ params["wta_t"] + params["bta"]
    non_empty = (jnp.sum(jnp.abs(ent_raw), axis=-1, keepdims=True)
                 != 0).astype(jnp.float32)
    ent_ta = ent_ta * non_empty
    score = jnp.einsum("bed,bad->bea", ent_ta, arg) / sqrt_d
    t2a = score / jnp.maximum(jnp.sum(jnp.abs(score), axis=2, keepdims=True),
                              1e-12)
    a2t = score / jnp.maximum(jnp.sum(jnp.abs(score), axis=1, keepdims=True),
                              1e-12)
    tok_argA = jnp.einsum("bea,bad->bed", t2a, arg)
    arg_tokA = jnp.einsum("bea,bed->bad", a2t, ent_ta)
    h2h = jnp.einsum("bst,btd->bsd", t2t, sent)
    h2h_ent = jnp.einsum("bsd,bse->bed", h2h, ent_map)
    a2a = jax.nn.softmax(jnp.einsum("bad,bcd->bac", arg, arg), axis=-1)
    u2u = jnp.einsum("bac,bcd->bad", a2a, arg)

    def exp_e(x):
        return jnp.broadcast_to(x[:, :, None, :], (B, E_, A_, x.shape[-1]))

    def exp_a(x):
        return jnp.broadcast_to(x[:, None, :, :], (B, E_, A_, x.shape[-1]))

    latent = jnp.concatenate([exp_e(ent_raw), exp_a(arg), exp_e(tok_argA),
                              exp_e(h2h_ent), exp_a(arg_tokA), exp_a(u2u)],
                             axis=-1)
    hidden = latent @ params["w1_t"] + params["b1"]
    act = 0.5 * hidden * (1.0 + lax.erf(hidden / math.sqrt(2.0)))
    return (act @ params["w2_t"] + params["b2"])[..., 0]


if __name__ == "__main__":
    B, S, D, E, A, H = 2, 10, 32, 6, 8, 64
    ARG_ROLES = 10          # classes 0..10 (11 total), ignore_index = 11
    NON_WEIGHT = 0.5

    key = jax.random.PRNGKey(0)
    ks = jax.random.split(key, 10)

    # Synthesized encoder outputs (stand-ins for BERT + subword gathering).
    sent = 0.5 * jax.random.normal(ks[0], (B, S, D), jnp.float32)
    arg_raw = 0.5 * jax.random.normal(ks[1], (B, A, D), jnp.float32)
    arg_w = jax.nn.softmax(jax.random.normal(ks[2], (B, A, A), jnp.float32),
                           axis=1)

    ent_map = jnp.zeros((B, S, E), jnp.float32)
    for b, s_, e_ in [(0, 0, 0), (0, 1, 1), (0, 2, 2), (0, 4, 3), (0, 5, 3),
                      (0, 6, 4), (1, 1, 0), (1, 2, 1), (1, 3, 2), (1, 5, 3)]:
        ent_map = ent_map.at[b, s_, e_].set(1.0)   # some entity slots left empty

    is_trig = jnp.zeros((B, S), jnp.float32)
    is_trig = is_trig.at[0, 2].set(1.0).at[1, 3].set(1.0).at[1, 4].set(1.0)

    # Simulated select_hidden_att output: nonneg, row L1-normalized, avg of 3 layers.
    att = jax.nn.softmax(jax.random.normal(ks[3], (3, B, S, S), jnp.float32),
                         axis=-1)
    att = att / (jnp.sum(att, axis=-1, keepdims=True) + 1e-9)
    t2t = jnp.mean(att, axis=0)

    arg_mapping = jnp.array([[0, 2, 4, 6, 8, 10, 11, 11],
                             [1, 3, 5, 7, 10, 11, 11, 11]], jnp.int32)
    arg_tags = jnp.array([[2, 4, 10, 10, 11, 11],
                          [1, 10, 10, 11, 11, 11]], jnp.int32)

    # Deterministic parameter init (weights pre-transposed to (in, out)).
    params = {
        "wta_t": 0.05 * jax.random.normal(ks[4], (3 * D, D), jnp.float32),
        "bta":   0.02 * jax.random.normal(ks[5], (1, D), jnp.float32),
        "w1_t":  0.05 * jax.random.normal(ks[6], (6 * D, H), jnp.float32),
        "b1":    0.02 * jax.random.normal(ks[7], (1, H), jnp.float32),
        "w2_t":  0.05 * jax.random.normal(ks[8], (H, 1), jnp.float32),
        "b2":    0.02 * jax.random.normal(ks[9], (1, 1), jnp.float32),
    }
    class_weights = jnp.ones((ARG_ROLES + 1,), jnp.float32).at[-1].set(NON_WEIGHT)

    # Glue: pre-transpose per-example matrices so the kernel does NN/NT matmuls.
    arg_wT = jnp.swapaxes(arg_w, 1, 2)      # (B, A, A)
    ent_mapT = jnp.swapaxes(ent_map, 1, 2)  # (B, E, S)

    score_kernel = earl_score_pallas(sent, arg_raw, arg_wT, ent_mapT, is_trig,
                                     t2t, params)
    score_kernel = jax.block_until_ready(score_kernel)

    score_ref = reference_score(sent, arg_raw, arg_w, ent_map, is_trig, t2t,
                                params)
    if not bool(jnp.allclose(score_kernel, score_ref, rtol=2e-2, atol=2e-2)):
        raise AssertionError("Pallas kernel output mismatch vs JAX reference")

    # map_arg_to_ids + weighted cross-entropy loss (plain JAX glue).
    mapped = map_arg_to_ids_jax(score_kernel, arg_mapping, ARG_ROLES)
    feats = mapped[:, :arg_tags.shape[1]]
    loss = weighted_cross_entropy(feats.reshape(-1, ARG_ROLES + 1),
                                  arg_tags.reshape(-1), class_weights,
                                  ARG_ROLES + 1)
    loss = jax.block_until_ready(loss)

    print("KERNEL_OK")
</pallas_src>

<mosaic_0001>
module attributes {stable_mosaic.version = 11 : i64} {
  func.func @kernel(%arg0: i32, %arg1: memref<2x10x32xf32, #tpu.memory_space<vmem>>, %arg2: memref<2x8x32xf32, #tpu.memory_space<vmem>>, %arg3: memref<2x8x8xf32, #tpu.memory_space<vmem>>, %arg4: memref<2x9x10xf32, #tpu.memory_space<vmem>>, %arg5: memref<2x10x10xf32, #tpu.memory_space<vmem>>, %arg6: memref<96x32xf32, #tpu.memory_space<vmem>>, %arg7: memref<1x32xf32, #tpu.memory_space<vmem>>, %arg8: memref<96x64xf32, #tpu.memory_space<vmem>>, %arg9: memref<96x64xf32, #tpu.memory_space<vmem>>, %arg10: memref<1x64xf32, #tpu.memory_space<vmem>>, %arg11: memref<1x64xf32, #tpu.memory_space<vmem>>, %arg12: memref<1x1xf32, #tpu.memory_space<vmem>>, %arg13: memref<1x1x128xf32, #tpu.memory_space<vmem>>) attributes {dimension_semantics = [#tpu.dimension_semantics<parallel>], iteration_bounds = array<i64: 1>, scalar_prefetch = 0 : i64, scratch_operands = 0 : i64, tpu.core_type = #tpu.core_type<tc>, window_params = [{transform_indices = @transform_0, window_bounds = array<i64: 2, 10, 32>}, {transform_indices = @transform_1, window_bounds = array<i64: 2, 8, 32>}, {transform_indices = @transform_2, window_bounds = array<i64: 2, 8, 8>}, {transform_indices = @transform_3, window_bounds = array<i64: 2, 9, 10>}, {transform_indices = @transform_4, window_bounds = array<i64: 2, 10, 10>}, {pipeline_mode = #tpu.pipeline_mode<synchronous>, transform_indices = @transform_5, window_bounds = array<i64: 96, 32>}, {pipeline_mode = #tpu.pipeline_mode<synchronous>, transform_indices = @transform_6, window_bounds = array<i64: 1, 32>}, {pipeline_mode = #tpu.pipeline_mode<synchronous>, transform_indices = @transform_7, window_bounds = array<i64: 96, 64>}, {pipeline_mode = #tpu.pipeline_mode<synchronous>, transform_indices = @transform_8, window_bounds = array<i64: 96, 64>}, {pipeline_mode = #tpu.pipeline_mode<synchronous>, transform_indices = @transform_9, window_bounds = array<i64: 1, 64>}, {pipeline_mode = #tpu.pipeline_mode<synchronous>, transform_indices = @transform_10, window_bounds = array<i64: 1, 64>}, {pipeline_mode = #tpu.pipeline_mode<synchronous>, transform_indices = @transform_11, window_bounds = array<i64: 1, 1>}, {transform_indices = @transform_12, window_bounds = array<i64: 1, 1, 128>}]} {
    %c0 = arith.constant 0 : index
    %c0_0 = arith.constant 0 : index
    %c0_1 = arith.constant 0 : index
    %0 = vector.load %arg1[%c0, %c0_0, %c0_1] : memref<2x10x32xf32, #tpu.memory_space<vmem>>, vector<2x10x32xf32>
    %c0_2 = arith.constant 0 : index
    %c0_3 = arith.constant 0 : index
    %c0_4 = arith.constant 0 : index
    %1 = vector.load %arg2[%c0_2, %c0_3, %c0_4] : memref<2x8x32xf32, #tpu.memory_space<vmem>>, vector<2x8x32xf32>
    %c0_5 = arith.constant 0 : index
    %c0_6 = arith.constant 0 : index
    %c0_7 = arith.constant 0 : index
    %2 = vector.load %arg3[%c0_5, %c0_6, %c0_7] : memref<2x8x8xf32, #tpu.memory_space<vmem>>, vector<2x8x8xf32>
    %c0_8 = arith.constant 0 : index
    %c0_9 = arith.constant 0 : index
    %c0_10 = arith.constant 0 : index
    %3 = vector.load %arg4[%c0_8, %c0_9, %c0_10] : memref<2x9x10xf32, #tpu.memory_space<vmem>>, vector<2x9x10xf32>
    %c0_11 = arith.constant 0 : index
    %c0_12 = arith.constant 0 : index
    %c0_13 = arith.constant 0 : index
    %4 = vector.load %arg5[%c0_11, %c0_12, %c0_13] : memref<2x10x10xf32, #tpu.memory_space<vmem>>, vector<2x10x10xf32>
    %5 = vector.extract_strided_slice %3 {offsets = [0, 0, 0], sizes = [2, 8, 10], strides = [1, 1, 1]} : vector<2x9x10xf32> to vector<2x8x10xf32>
    %cst = arith.constant dense<0.000000e+00> : vector<2x9x32xf32>
    %6 = tpu.matmul %3, %0, %cst {dimension_numbers = #tpu.dot_dimension_numbers<[2], [1], [1], [2], [0, 0, 0, 1, 1, 2], [0], [0]>} : vector<2x9x10xf32>, vector<2x10x32xf32>, vector<2x9x32xf32> -> vector<2x9x32xf32>
    %7 = vector.extract_strided_slice %6 {offsets = [0, 0, 0], sizes = [2, 8, 32], strides = [1, 1, 1]} : vector<2x9x32xf32> to vector<2x8x32xf32>
    %8 = vector.extract_strided_slice %6 {offsets = [0, 8, 0], sizes = [2, 1, 32], strides = [1, 1, 1]} : vector<2x9x32xf32> to vector<2x1x32xf32>
    %9 = vector.shape_cast %8 : vector<2x1x32xf32> to vector<2x1x32xf32>
    %10 = vector.broadcast %9 : vector<2x1x32xf32> to vector<2x8x32xf32>
    %11 = math.absf %5 : vector<2x8x10xf32>
    %cst_14 = arith.constant dense<0.000000e+00> : vector<2x8xf32>
    %12 = vector.multi_reduction <add>, %11, %cst_14 [2] : vector<2x8x10xf32> to vector<2x8xf32>
    %13 = vector.shape_cast %12 : vector<2x8xf32> to vector<2x8x1xf32>
    %cst_15 = arith.constant 0.000000e+00 : f32
    %14 = vector.broadcast %cst_15 : f32 to vector<2x8x1xf32>
    %15 = arith.cmpf ogt, %13, %14 : vector<2x8x1xf32>
    %16 = arith.extui %15 : vector<2x8x1xi1> to vector<2x8x1xi32>
    %17 = arith.sitofp %16 : vector<2x8x1xi32> to vector<2x8x1xf32>
    %cst_16 = arith.constant dense<0.000000e+00> : vector<2x8x32xf32>
    %18 = tpu.matmul %2, %1, %cst_16 {dimension_numbers = #tpu.dot_dimension_numbers<[2], [1], [1], [2], [0, 0, 0, 1, 1, 2], [0], [0]>} : vector<2x8x8xf32>, vector<2x8x32xf32>, vector<2x8x32xf32> -> vector<2x8x32xf32>
    %19 = arith.mulf %7, %10 : vector<2x8x32xf32>
    %20 = tpu.concatenate %7, %10, %19 in 2 : vector<2x8x32xf32>, vector<2x8x32xf32>, vector<2x8x32xf32> -> vector<2x8x96xf32>
    %21 = vector.shape_cast %20 : vector<2x8x96xf32> to vector<16x96xf32>
    %c0_17 = arith.constant 0 : index
    %c0_18 = arith.constant 0 : index
    %22 = vector.load %arg6[%c0_17, %c0_18] : memref<96x32xf32, #tpu.memory_space<vmem>>, vector<96x32xf32>
    %cst_19 = arith.constant dense<0.000000e+00> : vector<16x32xf32>
    %23 = tpu.matmul %21, %22, %cst_19 {dimension_numbers = #tpu.dot_dimension_numbers<[1], [0], [0], [1], [0, 0, 1, 1], [], []>} : vector<16x96xf32>, vector<96x32xf32>, vector<16x32xf32> -> vector<16x32xf32>
    %c0_20 = arith.constant 0 : index
    %c0_21 = arith.constant 0 : index
    %24 = vector.load %arg7[%c0_20, %c0_21] : memref<1x32xf32, #tpu.memory_space<vmem>>, vector<1x32xf32>
    %25 = vector.broadcast %24 : vector<1x32xf32> to vector<16x32xf32>
    %26 = arith.addf %23, %25 : vector<16x32xf32>
    %27 = vector.shape_cast %26 : vector<16x32xf32> to vector<2x8x32xf32>
    %28 = vector.broadcast %17 : vector<2x8x1xf32> to vector<2x8x32xf32>
    %29 = arith.mulf %27, %28 : vector<2x8x32xf32>
    %cst_22 = arith.constant dense<0.000000e+00> : vector<2x8x8xf32>
    %30 = tpu.matmul %29, %18, %cst_22 {dimension_numbers = #tpu.dot_dimension_numbers<[2], [2], [1], [1], [0, 0, 0, 1, 1, 1], [0], [0]>} : vector<2x8x32xf32>, vector<2x8x32xf32>, vector<2x8x8xf32> -> vector<2x8x8xf32>
    %cst_23 = arith.constant dense<0.000000e+00> : vector<2x8x8xf32>
    %31 = tpu.matmul %18, %29, %cst_23 {dimension_numbers = #tpu.dot_dimension_numbers<[2], [2], [1], [1], [0, 0, 0, 1, 1, 1], [0], [0]>} : vector<2x8x32xf32>, vector<2x8x32xf32>, vector<2x8x8xf32> -> vector<2x8x8xf32>
    %32 = math.absf %30 : vector<2x8x8xf32>
    %cst_24 = arith.constant dense<0.000000e+00> : vector<2x8xf32>
    %33 = vector.multi_reduction <add>, %32, %cst_24 [2] : vector<2x8x8xf32> to vector<2x8xf32>
    %34 = vector.shape_cast %33 : vector<2x8xf32> to vector<2x8x1xf32>
    %cst_25 = arith.constant 9.99999996E-13 : f32
    %35 = vector.broadcast %cst_25 : f32 to vector<2x8x1xf32>
    %36 = arith.maximumf %34, %35 : vector<2x8x1xf32>
    %37 = vector.broadcast %36 : vector<2x8x1xf32> to vector<2x8x8xf32>
    %38 = arith.divf %30, %37 : vector<2x8x8xf32>
    %39 = math.absf %31 : vector<2x8x8xf32>
    %cst_26 = arith.constant dense<0.000000e+00> : vector<2x8xf32>
    %40 = vector.multi_reduction <add>, %39, %cst_26 [2] : vector<2x8x8xf32> to vector<2x8xf32>
    %41 = vector.shape_cast %40 : vector<2x8xf32> to vector<2x8x1xf32>
    %cst_27 = arith.constant 9.99999996E-13 : f32
    %42 = vector.broadcast %cst_27 : f32 to vector<2x8x1xf32>
    %43 = arith.maximumf %41, %42 : vector<2x8x1xf32>
    %44 = vector.broadcast %43 : vector<2x8x1xf32> to vector<2x8x8xf32>
    %45 = arith.divf %31, %44 : vector<2x8x8xf32>
    %cst_28 = arith.constant dense<0.000000e+00> : vector<2x8x32xf32>
    %46 = tpu.matmul %38, %18, %cst_28 {dimension_numbers = #tpu.dot_dimension_numbers<[2], [1], [1], [2], [0, 0, 0, 1, 1, 2], [0], [0]>} : vector<2x8x8xf32>, vector<2x8x32xf32>, vector<2x8x32xf32> -> vector<2x8x32xf32>
    %cst_29 = arith.constant dense<0.000000e+00> : vector<2x8x32xf32>
    %47 = tpu.matmul %45, %29, %cst_29 {dimension_numbers = #tpu.dot_dimension_numbers<[2], [1], [1], [2], [0, 0, 0, 1, 1, 2], [0], [0]>} : vector<2x8x8xf32>, vector<2x8x32xf32>, vector<2x8x32xf32> -> vector<2x8x32xf32>
    %cst_30 = arith.constant dense<0.000000e+00> : vector<2x8x10xf32>
    %48 = tpu.matmul %5, %4, %cst_30 {dimension_numbers = #tpu.dot_dimension_numbers<[2], [1], [1], [2], [0, 0, 0, 1, 1, 2], [0], [0]>} : vector<2x8x10xf32>, vector<2x10x10xf32>, vector<2x8x10xf32> -> vector<2x8x10xf32>
    %cst_31 = arith.constant dense<0.000000e+00> : vector<2x8x32xf32>
    %49 = tpu.matmul %48, %0, %cst_31 {dimension_numbers = #tpu.dot_dimension_numbers<[2], [1], [1], [2], [0, 0, 0, 1, 1, 2], [0], [0]>} : vector<2x8x10xf32>, vector<2x10x32xf32>, vector<2x8x32xf32> -> vector<2x8x32xf32>
    %cst_32 = arith.constant dense<0.000000e+00> : vector<2x8x8xf32>
    %50 = tpu.matmul %18, %18, %cst_32 {dimension_numbers = #tpu.dot_dimension_numbers<[2], [2], [1], [1], [0, 0, 0, 1, 1, 1], [0], [0]>} : vector<2x8x32xf32>, vector<2x8x32xf32>, vector<2x8x8xf32> -> vector<2x8x8xf32>
    %cst_33 = arith.constant dense<0xFF800000> : vector<2x8xf32>
    %51 = vector.multi_reduction <maximumf>, %50, %cst_33 [2] : vector<2x8x8xf32> to vector<2x8xf32>
    %52 = vector.shape_cast %51 : vector<2x8xf32> to vector<2x8x1xf32>
    %53 = vector.broadcast %52 : vector<2x8x1xf32> to vector<2x8x8xf32>
    %54 = arith.subf %50, %53 : vector<2x8x8xf32>
    %55 = math.exp %54 : vector<2x8x8xf32>
    %cst_34 = arith.constant dense<0.000000e+00> : vector<2x8xf32>
    %56 = vector.multi_reduction <add>, %55, %cst_34 [2] : vector<2x8x8xf32> to vector<2x8xf32>
    %57 = vector.shape_cast %56 : vector<2x8xf32> to vector<2x8x1xf32>
    %58 = vector.broadcast %57 : vector<2x8x1xf32> to vector<2x8x8xf32>
    %59 = arith.divf %55, %58 : vector<2x8x8xf32>
    %cst_35 = arith.constant dense<0.000000e+00> : vector<2x8x32xf32>
    %60 = tpu.matmul %59, %18, %cst_35 {dimension_numbers = #tpu.dot_dimension_numbers<[2], [1], [1], [2], [0, 0, 0, 1, 1, 2], [0], [0]>} : vector<2x8x8xf32>, vector<2x8x32xf32>, vector<2x8x32xf32> -> vector<2x8x32xf32>
    %61 = tpu.concatenate %7, %46, %49 in 2 : vector<2x8x32xf32>, vector<2x8x32xf32>, vector<2x8x32xf32> -> vector<2x8x96xf32>
    %62 = tpu.concatenate %18, %47, %60 in 2 : vector<2x8x32xf32>, vector<2x8x32xf32>, vector<2x8x32xf32> -> vector<2x8x96xf32>
    %63 = vector.shape_cast %61 : vector<2x8x96xf32> to vector<16x96xf32>
    %c0_36 = arith.constant 0 : index
    %c0_37 = arith.constant 0 : index
    %64 = vector.load %arg8[%c0_36, %c0_37] : memref<96x64xf32, #tpu.memory_space<vmem>>, vector<96x64xf32>
    %cst_38 = arith.constant dense<0.000000e+00> : vector<16x64xf32>
    %65 = tpu.matmul %63, %64, %cst_38 {dimension_numbers = #tpu.dot_dimension_numbers<[1], [0], [0], [1], [0, 0, 1, 1], [], []>} : vector<16x96xf32>, vector<96x64xf32>, vector<16x64xf32> -> vector<16x64xf32>
    %66 = vector.shape_cast %62 : vector<2x8x96xf32> to vector<16x96xf32>
    %c0_39 = arith.constant 0 : index
    %c0_40 = arith.constant 0 : index
    %67 = vector.load %arg9[%c0_39, %c0_40] : memref<96x64xf32, #tpu.memory_space<vmem>>, vector<96x64xf32>
    %cst_41 = arith.constant dense<0.000000e+00> : vector<16x64xf32>
    %68 = tpu.matmul %66, %67, %cst_41 {dimension_numbers = #tpu.dot_dimension_numbers<[1], [0], [0], [1], [0, 0, 1, 1], [], []>} : vector<16x96xf32>, vector<96x64xf32>, vector<16x64xf32> -> vector<16x64xf32>
    %69 = tpu.iota {dimensions = array<i32: 0>} : vector<128x16xi32>
    %70 = tpu.iota {dimensions = array<i32: 1>} : vector<128x16xi32>
    %c8_i32 = arith.constant 8 : i32
    %71 = vector.broadcast %c8_i32 : i32 to vector<128x16xi32>
    %72 = arith.muli %70, %71 : vector<128x16xi32>
    %73 = arith.cmpi sge, %69, %72 : vector<128x16xi32>
    %c1_i32 = arith.constant 1 : i32
    %74 = vector.broadcast %c1_i32 : i32 to vector<128x16xi32>
    %75 = arith.addi %70, %74 : vector<128x16xi32>
    %c8_i32_42 = arith.constant 8 : i32
    %76 = vector.broadcast %c8_i32_42 : i32 to vector<128x16xi32>
    %77 = arith.muli %75, %76 : vector<128x16xi32>
    %78 = arith.cmpi slt, %69, %77 : vector<128x16xi32>
    %79 = arith.andi %73, %78 : vector<128x16xi1>
    %80 = arith.extui %79 : vector<128x16xi1> to vector<128x16xi32>
    %81 = arith.sitofp %80 : vector<128x16xi32> to vector<128x16xf32>
    %cst_43 = arith.constant dense<0.000000e+00> : vector<128x64xf32>
    %82 = tpu.matmul %81, %65, %cst_43 {dimension_numbers = #tpu.dot_dimension_numbers<[1], [0], [0], [1], [0, 0, 1, 1], [], []>} : vector<128x16xf32>, vector<16x64xf32>, vector<128x64xf32> -> vector<128x64xf32>
    %83 = vector.shape_cast %68 : vector<16x64xf32> to vector<2x1x8x64xf32>
    %84 = vector.shape_cast %83 : vector<2x1x8x64xf32> to vector<2x1x8x64xf32>
    %85 = vector.broadcast %84 : vector<2x1x8x64xf32> to vector<2x8x8x64xf32>
    %86 = vector.shape_cast %85 : vector<2x8x8x64xf32> to vector<128x64xf32>
    %87 = arith.addf %82, %86 : vector<128x64xf32>
    %c0_44 = arith.constant 0 : index
    %c0_45 = arith.constant 0 : index
    %88 = vector.load %arg10[%c0_44, %c0_45] : memref<1x64xf32, #tpu.memory_space<vmem>>, vector<1x64xf32>
    %89 = vector.broadcast %88 : vector<1x64xf32> to vector<128x64xf32>
    %90 = arith.addf %87, %89 : vector<128x64xf32>
    %cst_46 = arith.constant 5.000000e-01 : f32
    %91 = vector.broadcast %cst_46 : f32 to vector<128x64xf32>
    %92 = arith.mulf %91, %90 : vector<128x64xf32>
    %cst_47 = arith.constant 0.707106769 : f32
    %93 = vector.broadcast %cst_47 : f32 to vector<128x64xf32>
    %94 = arith.mulf %90, %93 : vector<128x64xf32>
    %95 = math.erf %94 : vector<128x64xf32>
    %cst_48 = arith.constant 1.000000e+00 : f32
    %96 = vector.broadcast %cst_48 : f32 to vector<128x64xf32>
    %97 = arith.addf %96, %95 : vector<128x64xf32>
    %98 = arith.mulf %92, %97 : vector<128x64xf32>
    %c0_49 = arith.constant 0 : index
    %c0_50 = arith.constant 0 : index
    %99 = vector.load %arg11[%c0_49, %c0_50] : memref<1x64xf32, #tpu.memory_space<vmem>>, vector<1x64xf32>
    %cst_51 = arith.constant dense<0.000000e+00> : vector<1x128xf32>
    %100 = tpu.matmul %99, %98, %cst_51 {dimension_numbers = #tpu.dot_dimension_numbers<[1], [1], [0], [0], [0, 0, 1, 0], [], []>} : vector<1x64xf32>, vector<128x64xf32>, vector<1x128xf32> -> vector<1x128xf32>
    %c0_52 = arith.constant 0 : index
    %c0_53 = arith.constant 0 : index
    %101 = vector.load %arg12[%c0_52, %c0_53] : memref<1x1xf32, #tpu.memory_space<vmem>>, vector<1x1xf32>
    %102 = vector.broadcast %101 : vector<1x1xf32> to vector<1x128xf32>
    %103 = arith.addf %100, %102 : vector<1x128xf32>
    %c0_54 = arith.constant 0 : index
    %c0_55 = arith.constant 0 : index
    %c0_56 = arith.constant 0 : index
    %104 = vector.load %arg13[%c0_54, %c0_55, %c0_56] : memref<1x1x128xf32, #tpu.memory_space<vmem>>, vector<1x1x128xf32>
    %105 = vector.shape_cast %104 : vector<1x1x128xf32> to vector<1x128xf32>
    %106 = vector.shape_cast %103 : vector<1x128xf32> to vector<1x1x128xf32>
    tpu.vector_store %arg13[%c0_54, %c0_55, %c0_56], %106 {strides = array<i32>} : memref<1x1x128xf32, #tpu.memory_space<vmem>>, vector<1x1x128xf32>,
    return
  }
  func.func @transform_0(%arg0: i32) -> (i32, i32, i32) {
    %c0_i32 = arith.constant 0 : i32
    %c0_i32_0 = arith.constant 0 : i32
    %c0_i32_1 = arith.constant 0 : i32
    return %arg0, %c0_i32, %c0_i32_0 : i32, i32, i32
  }
  func.func @transform_1(%arg0: i32) -> (i32, i32, i32) {
    %c0_i32 = arith.constant 0 : i32
    %c0_i32_0 = arith.constant 0 : i32
    %c0_i32_1 = arith.constant 0 : i32
    return %arg0, %c0_i32, %c0_i32_0 : i32, i32, i32
  }
  func.func @transform_2(%arg0: i32) -> (i32, i32, i32) {
    %c0_i32 = arith.constant 0 : i32
    %c0_i32_0 = arith.constant 0 : i32
    %c0_i32_1 = arith.constant 0 : i32
    return %arg0, %c0_i32, %c0_i32_0 : i32, i32, i32
  }
  func.func @transform_3(%arg0: i32) -> (i32, i32, i32) {
    %c0_i32 = arith.constant 0 : i32
    %c0_i32_0 = arith.constant 0 : i32
    %c0_i32_1 = arith.constant 0 : i32
    return %arg0, %c0_i32, %c0_i32_0 : i32, i32, i32
  }
  func.func @transform_4(%arg0: i32) -> (i32, i32, i32) {
    %c0_i32 = arith.constant 0 : i32
    %c0_i32_0 = arith.constant 0 : i32
    %c0_i32_1 = arith.constant 0 : i32
    return %arg0, %c0_i32, %c0_i32_0 : i32, i32, i32
  }
  func.func @transform_5(%arg0: i32) -> (i32, i32) {
    %c0_i32 = arith.constant 0 : i32
    %c0_i32_0 = arith.constant 0 : i32
    %c0_i32_1 = arith.constant 0 : i32
    return %c0_i32, %c0_i32_0 : i32, i32
  }
  func.func @transform_6(%arg0: i32) -> (i32, i32) {
    %c0_i32 = arith.constant 0 : i32
    %c0_i32_0 = arith.constant 0 : i32
    %c0_i32_1 = arith.constant 0 : i32
    return %c0_i32, %c0_i32_0 : i32, i32
  }
  func.func @transform_7(%arg0: i32) -> (i32, i32) {
    %c0_i32 = arith.constant 0 : i32
    %c0_i32_0 = arith.constant 0 : i32
    %c0_i32_1 = arith.constant 0 : i32
    return %c0_i32, %c0_i32_0 : i32, i32
  }
  func.func @transform_8(%arg0: i32) -> (i32, i32) {
    %c0_i32 = arith.constant 0 : i32
    %c0_i32_0 = arith.constant 0 : i32
    %c0_i32_1 = arith.constant 0 : i32
    return %c0_i32, %c0_i32_0 : i32, i32
  }
  func.func @transform_9(%arg0: i32) -> (i32, i32) {
    %c0_i32 = arith.constant 0 : i32
    %c0_i32_0 = arith.constant 0 : i32
    %c0_i32_1 = arith.constant 0 : i32
    return %c0_i32, %c0_i32_0 : i32, i32
  }
  func.func @transform_10(%arg0: i32) -> (i32, i32) {
    %c0_i32 = arith.constant 0 : i32
    %c0_i32_0 = arith.constant 0 : i32
    %c0_i32_1 = arith.constant 0 : i32
    return %c0_i32, %c0_i32_0 : i32, i32
  }
  func.func @transform_11(%arg0: i32) -> (i32, i32) {
    %c0_i32 = arith.constant 0 : i32
    %c0_i32_0 = arith.constant 0 : i32
    %c0_i32_1 = arith.constant 0 : i32
    return %c0_i32, %c0_i32_0 : i32, i32
  }
  func.func @transform_12(%arg0: i32) -> (i32, i32, i32) {
    %c0_i32 = arith.constant 0 : i32
    %c0_i32_0 = arith.constant 0 : i32
    %c0_i32_1 = arith.constant 0 : i32
    return %arg0, %c0_i32, %c0_i32_0 : i32, i32, i32
  }
}

</mosaic_0001>

<llo_original>
// kernel: tpu_custom_call.1
$region0: #{tpu_custom_call.1}
  #allocation0 [shape = 'u32[]', space=smem, size = 0x4, offset = 0x4, fixed_abs, tag = 'smem constant byte address 0x4 - core index']
  #allocation1 [shape = 'u32[144,128]{1,0:T(1,128)}', space=vmem, size = 0x12000, scoped, tag = 'internal scratch']
  #allocation2 [shape = 'f32[1,1]{1,0:T(1,128)S(1)}', space=vmem, size = 0x200, scoped, tag = 'scoped memory for tpu_custom_call.1']
  %s0 = inlined_call_operand.vmem [shape: f32[2,10,32], index: 0, kind: input, shape index: {}]
  %s1 = inlined_call_operand.vmem [shape: f32[2,8,32], index: 1, kind: input, shape index: {}]
  %s2 = inlined_call_operand.vmem [shape: f32[2,8,8], index: 2, kind: input, shape index: {}]
  %s3 = inlined_call_operand.vmem [shape: f32[2,9,10], index: 3, kind: input, shape index: {}]
  %s4 = inlined_call_operand.vmem [shape: f32[2,10,10], index: 4, kind: input, shape index: {}]
  %s5 = inlined_call_operand.vmem [shape: f32[96,32], index: 5, kind: input, shape index: {}]
  %s6 = inlined_call_operand.vmem [shape: f32[1,32], index: 6, kind: input, shape index: {}]
  %s7 = inlined_call_operand.vmem [shape: f32[96,64], index: 7, kind: input, shape index: {}]
  %s8 = inlined_call_operand.vmem [shape: f32[96,64], index: 8, kind: input, shape index: {}]
  %s9 = inlined_call_operand.vmem [shape: f32[1,64], index: 9, kind: input, shape index: {}]
  %s10 = inlined_call_operand.vmem [shape: f32[1,64], index: 10, kind: input, shape index: {}]
  %s11 = inlined_call_operand.<no memory space> [shape: f32[1,1], index: 11, kind: input, shape index: {}]
  %s12 = inlined_call_operand.hbm [shape: f32[1,1,128], index: 12, kind: output, shape index: {}]
  %s13 = sld [smem:[#allocation0]]
  $region58: #{tpu_custom_call.1} parent=0
    _
  %s15 = ssub.s32 1, %s13
  %s16 = scalar_select 0, %s15, %s13
  %v17 = vstv %s11
  %18 = vst [vmem:[#allocation2] sm:$0x1] %v17
  $region1: #{tpu_custom_call.1} parent=0
    #allocation3 [shape = 'u8[512]{0}', space=vmem, size = 0x400, scoped, tag = 'output window, operand 0, single buffered']
    #allocation4 [shape = 's32[1]{0}', space=sflag, size = 0x4, scoped, tag = 'scoped memory for tpu_custom_call.1']
    %19 = vsyncpa [#allocation4], 0
    // Predicated region
    $region2: #{tpu_custom_call.1} parent=1 // pred_check
      _
    $region3: #{tpu_custom_call.1} parent=1 // pred_check_branch
      %21 = sbr.rel (0) target = $region5
    $region4: #{tpu_custom_call.1} parent=1 // pred_region
      _
    $region5: #{tpu_custom_call.1} parent=1 // pred_fallthru
      _
    // Predicated region
    $region6: #{tpu_custom_call.1} parent=1 // pred_check
      _
    $region7: #{tpu_custom_call.1} parent=1 // pred_check_branch
      %23 = sbr.rel (0) target = $region9
    $region8: #{tpu_custom_call.1} parent=1 // pred_region
      _
    $region9: #{tpu_custom_call.1} parent=1 // pred_fallthru
      _
    // Predicated region
    $region10: #{tpu_custom_call.1} parent=1 // pred_check
      _
    $region11: #{tpu_custom_call.1} parent=1 // pred_check_branch
      %25 = sbr.rel (0) target = $region13
    $region12: #{tpu_custom_call.1} parent=1 // pred_region
      _
    $region13: #{tpu_custom_call.1} parent=1 // pred_fallthru
      _
    // Predicated region
    $region14: #{tpu_custom_call.1} parent=1 // pred_check
      _
    $region15: #{tpu_custom_call.1} parent=1 // pred_check_branch
      %27 = sbr.rel (0) target = $region17
    $region16: #{tpu_custom_call.1} parent=1 // pred_region
      _
    $region17: #{tpu_custom_call.1} parent=1 // pred_fallthru
      _
    // Predicated region
    $region18: #{tpu_custom_call.1} parent=1 // pred_check
      _
    $region19: #{tpu_custom_call.1} parent=1 // pred_check_branch
      %29 = sbr.rel (0) target = $region21
    $region20: #{tpu_custom_call.1} parent=1 // pred_region
      _
    $region21: #{tpu_custom_call.1} parent=1 // pred_fallthru
      _
    // Predicated region
    $region22: #{tpu_custom_call.1} parent=1 // pred_check
      _
    $region23: #{tpu_custom_call.1} parent=1 // pred_check_branch
      %31 = sbr.rel (0) target = $region25
    $region24: #{tpu_custom_call.1} parent=1 // pred_region
      _
    $region25: #{tpu_custom_call.1} parent=1 // pred_fallthru
      _
    // Predicated region
    $region26: #{tpu_custom_call.1} parent=1 // pred_check
      _
    $region27: #{tpu_custom_call.1} parent=1 // pred_check_branch
      %33 = sbr.rel (0) target = $region29
    $region28: #{tpu_custom_call.1} parent=1 // pred_region
      _
    $region29: #{tpu_custom_call.1} parent=1 // pred_fallthru
      _
    // Predicated region
    $region30: #{tpu_custom_call.1} parent=1 // pred_check
      _
    $region31: #{tpu_custom_call.1} parent=1 // pred_check_branch
      %35 = sbr.rel (0) target = $region33
    $region32: #{tpu_custom_call.1} parent=1 // pred_region
      _
    $region33: #{tpu_custom_call.1} parent=1 // pred_fallthru
      _
    // Predicated region
    $region34: #{tpu_custom_call.1} parent=1 // pred_check
      _
    $region35: #{tpu_custom_call.1} parent=1 // pred_check_branch
      %37 = sbr.rel (0) target = $region37
    $region36: #{tpu_custom_call.1} parent=1 // pred_region
      _
    $region37: #{tpu_custom_call.1} parent=1 // pred_fallthru
      _
    // Predicated region
    $region38: #{tpu_custom_call.1} parent=1 // pred_check
      _
    $region39: #{tpu_custom_call.1} parent=1 // pred_check_branch
      %39 = sbr.rel (0) target = $region41
    $region40: #{tpu_custom_call.1} parent=1 // pred_region
      _
    $region41: #{tpu_custom_call.1} parent=1 // pred_fallthru
      _
    // Predicated region
    $region42: #{tpu_custom_call.1} parent=1 // pred_check
      _
    $region43: #{tpu_custom_call.1} parent=1 // pred_check_branch
      %41 = sbr.rel (0) target = $region45
    $region44: #{tpu_custom_call.1} parent=1 // pred_region
      _
    $region45: #{tpu_custom_call.1} parent=1 // pred_fallthru
      _
    // Predicated region
    $region46: #{tpu_custom_call.1} parent=1 // pred_check
      _
    $region47: #{tpu_custom_call.1} parent=1 // pred_check_branch
      %43 = sbr.rel (0) target = $region49
    $region48: #{tpu_custom_call.1} parent=1 // pred_region
      _
    $region49: #{tpu_custom_call.1} parent=1 // pred_fallthru
      _
    %v44 = vld [vmem:[%s0] sm:$0xff]
    %v45 = vld [vmem:[%s0 + $0x8] sm:$0x3]
    %v46 = vld [vmem:[%s0 + $0x10] sm:$0xff]
    %v47 = vld [vmem:[%s0 + $0x18] sm:$0x3]
    %v48 = vld [vmem:[%s1] sm:$0xff]
    %v49 = vld [vmem:[%s1 + $0x8] sm:$0xff]
    %v50 = vld [vmem:[%s2] sm:$0xff]
    %v51 = vld [vmem:[%s2 + $0x8] sm:$0xff]
    %v52 = vld [vmem:[%s3] sm:$0xff]
    %v53 = vld [vmem:[%s3 + $0x8] sm:$0x1]
    %v54 = vld [vmem:[%s3 + $0x10] sm:$0xff]
    %v55 = vld [vmem:[%s3 + $0x18] sm:$0x1]
    %v56 = vld [vmem:[%s4] sm:$0xff]
    %v57 = vld [vmem:[%s4 + $0x8] sm:$0x3]
    %v58 = vld [vmem:[%s4 + $0x10] sm:$0xff]
    %v59 = vld [vmem:[%s4 + $0x18] sm:$0x3]
    %vm60 = vcmask 80896
    %v62 = vsel %vm60, %v52, 0
    %v65 = vsel %vm60, %v53, 0
    %vm67 = vcmask 1041408
    %v69 = vsel %vm67, %v45, 0
    %71 = vmatprep.subr.mxu0 0.0
    %72 = vmatpush1.msra.mxu0 %v44
    %73 = vmatprep.subr.mxu0 0.0
    %74 = vmatpush1.msra.mxu0 %v69
    %75 = vmatprep.subr.mxu0 0.0
    %76 = vmatpush1.msra.mxu0 0.0
    %77 = vmatprep.subr.mxu0 0.0
    %78 = vmatpush1.msra.mxu0 0.0
    %79 = vmatprep.subr.mxu0 0.0
    %80 = vmatpush1.msra.mxu0 0.0
    %81 = vmatprep.subr.mxu0 0.0
    %82 = vmatpush1.msra.mxu0 0.0
    %83 = vmatprep.subr.mxu0 0.0
    %84 = vmatpush1.msra.mxu0 0.0
    %85 = vmatprep.subr.mxu0 0.0
    %86 = vmatpush1.msra.mxu0 0.0
    %87 = vmatprep.subr.mxu0 0.0
    %88 = vmatpush1.msra.mxu0 0.0
    %89 = vmatprep.subr.mxu0 0.0
    %90 = vmatpush1.msra.mxu0 0.0
    %91 = vmatprep.subr.mxu0 0.0
    %92 = vmatpush1.msra.mxu0 0.0
    %93 = vmatprep.subr.mxu0 0.0
    %94 = vmatpush1.msra.mxu0 0.0
    %95 = vmatprep.subr.mxu0 0.0
    %96 = vmatpush1.msra.mxu0 0.0
    %97 = vmatprep.subr.mxu0 0.0
    %98 = vmatpush1.msra.mxu0 0.0
    %99 = vmatprep.subr.mxu0 0.0
    %100 = vmatpush1.msra.mxu0 0.0
    %101 = vmatprep.subr.mxu0 0.0
    %102 = vmatpush1.msra.mxu0 0.0
    %103 = vmatprep.subr.mxu0 0.0
    %104 = vmatpush1.msra.mxu0 0.0
    %105 = vmatprep.subr.mxu0 0.0
    %106 = vmatpush1.msra.mxu0 0.0
    %107 = vmatprep.subr.mxu0 0.0
    %108 = vmatpush1.msra.mxu0 0.0
    %109 = vmatprep.subr.mxu0 0.0
    %110 = vmatpush1.msra.mxu0 0.0
    %111 = vmatprep.subr.mxu0 0.0
    %112 = vmatpush1.msra.mxu0 0.0
    %113 = vmatprep.subr.mxu0 0.0
    %114 = vmatpush1.msra.mxu0 0.0
    %115 = vmatprep.subr.mxu0 0.0
    %116 = vmatpush1.msra.mxu0 0.0
    %117 = vmatprep.subr.mxu0 0.0
    %118 = vmatpush1.msra.mxu0 0.0
    %119 = vmatprep.subr.mxu0 0.0
    %120 = vmatpush1.msra.mxu0 0.0
    %121 = vmatprep.subr.mxu0 0.0
    %122 = vmatpush1.msra.mxu0 0.0
    %123 = vmatprep.subr.mxu0 0.0
    %124 = vmatpush1.msra.mxu0 0.0
    %125 = vmatprep.subr.mxu0 0.0
    %126 = vmatpush1.msra.mxu0 0.0
    %127 = vmatprep.subr.mxu0 0.0
    %128 = vmatpush1.msra.mxu0 0.0
    %129 = vmatprep.subr.mxu0 0.0
    %130 = vmatpush1.msra.mxu0 0.0
    %131 = vmatprep.subr.mxu0 0.0
    %132 = vmatpush1.msra.mxu0 0.0
    %133 = vmatprep.subr.mxu0 0.0
    %134 = vmatpush1.msra.mxu0 0.0
    %135 = vmatprep.mubr.f32.mxu0 0.0
    %136 = vmatmul.mubr.f32.gmra.mrb[0].mxu0 %v62
    %v137 = vpop.f32.mrb[0].mxu0
    %v138 = vadd.f32 0.0, %v137
    %v139 = vpop.f32.mrb[0].mxu0
    %140 = vmatprep.mubr.f32.mxu0 0.0
    %141 = vmatmul.mubr.f32.gmra.mrb[0].mxu0 %v65
    %v142 = vpop.f32.mrb[0].mxu0
    %v143 = vadd.f32 0.0, %v142
    %v144 = vpop.f32.mrb[0].mxu0
    %145 = vdwg.mxu0
    %v147 = vsel %vm60, %v54, 0
    %v150 = vsel %vm60, %v55, 0
    %v153 = vsel %vm67, %v47, 0
    %155 = vmatprep.subr.mxu0 0.0
    %156 = vmatpush1.msra.mxu0 %v46
    %157 = vmatprep.subr.mxu0 0.0
    %158 = vmatpush1.msra.mxu0 %v153
    %159 = vmatprep.subr.mxu0 0.0
    %160 = vmatpush1.msra.mxu0 0.0
    %161 = vmatprep.subr.mxu0 0.0
    %162 = vmatpush1.msra.mxu0 0.0
    %163 = vmatprep.subr.mxu0 0.0
    %164 = vmatpush1.msra.mxu0 0.0
    %165 = vmatprep.subr.mxu0 0.0
    %166 = vmatpush1.msra.mxu0 0.0
    %167 = vmatprep.subr.mxu0 0.0
    %168 = vmatpush1.msra.mxu0 0.0
    %169 = vmatprep.subr.mxu0 0.0
    %170 = vmatpush1.msra.mxu0 0.0
    %171 = vmatprep.subr.mxu0 0.0
    %172 = vmatpush1.msra.mxu0 0.0
    %173 = vmatprep.subr.mxu0 0.0
    %174 = vmatpush1.msra.mxu0 0.0
    %175 = vmatprep.subr.mxu0 0.0
    %176 = vmatpush1.msra.mxu0 0.0
    %177 = vmatprep.subr.mxu0 0.0
    %178 = vmatpush1.msra.mxu0 0.0
    %179 = vmatprep.subr.mxu0 0.0
    %180 = vmatpush1.msra.mxu0 0.0
    %181 = vmatprep.subr.mxu0 0.0
    %182 = vmatpush1.msra.mxu0 0.0
    %183 = vmatprep.subr.mxu0 0.0
    %184 = vmatpush1.msra.mxu0 0.0
    %185 = vmatprep.subr.mxu0 0.0
    %186 = vmatpush1.msra.mxu0 0.0
    %187 = vmatprep.subr.mxu0 0.0
    %188 = vmatpush1.msra.mxu0 0.0
    %189 = vmatprep.subr.mxu0 0.0
    %190 = vmatpush1.msra.mxu0 0.0
    %191 = vmatprep.subr.mxu0 0.0
    %192 = vmatpush1.msra.mxu0 0.0
    %193 = vmatprep.subr.mxu0 0.0
    %194 = vmatpush1.msra.mxu0 0.0
    %195 = vmatprep.subr.mxu0 0.0
    %196 = vmatpush1.msra.mxu0 0.0
    %197 = vmatprep.subr.mxu0 0.0
    %198 = vmatpush1.msra.mxu0 0.0
    %199 = vmatprep.subr.mxu0 0.0
    %200 = vmatpush1.msra.mxu0 0.0
    %201 = vmatprep.subr.mxu0 0.0
    %202 = vmatpush1.msra.mxu0 0.0
    %203 = vmatprep.subr.mxu0 0.0
    %204 = vmatpush1.msra.mxu0 0.0
    %205 = vmatprep.subr.mxu0 0.0
    %206 = vmatpush1.msra.mxu0 0.0
    %207 = vmatprep.subr.mxu0 0.0
    %208 = vmatpush1.msra.mxu0 0.0
    %209 = vmatprep.subr.mxu0 0.0
    %210 = vmatpush1.msra.mxu0 0.0
    %211 = vmatprep.subr.mxu0 0.0
    %212 = vmatpush1.msra.mxu0 0.0
    %213 = vmatprep.subr.mxu0 0.0
    %214 = vmatpush1.msra.mxu0 0.0
    %215 = vmatprep.subr.mxu0 0.0
    %216 = vmatpush1.msra.mxu0 0.0
    %217 = vmatprep.subr.mxu0 0.0
    %218 = vmatpush1.msra.mxu0 0.0
    %219 = vmatprep.mubr.f32.mxu0 0.0
    %220 = vmatmul.mubr.f32.gmra.mrb[0].mxu0 %v147
    %v221 = vpop.f32.mrb[0].mxu0
    %v222 = vadd.f32 0.0, %v221
    %v223 = vpop.f32.mrb[0].mxu0
    %224 = vmatprep.mubr.f32.mxu0 0.0
    %225 = vmatmul.mubr.f32.gmra.mrb[0].mxu0 %v150
    %v226 = vpop.f32.mrb[0].mxu0
    %v227 = vadd.f32 0.0, %v226
    %v228 = vpop.f32.mrb[0].mxu0
    %229 = vdwg.mxu0
    %v230 = vlaneseq
    %v231 = vshrl.u32 %v230, 7
    %v232 = vsub.s32 0, %v231
    %v233 = vrot.slane %v143, %v232
    %v234 = vlaneseq
    %v235 = vshrl.u32 %v234, 7
    %v236 = vsub.s32 0, %v235
    %v237 = vrot.slane %v227, %v236
    %v238 = vand.u32 2147483647, %v52
    %v239 = vand.u32 2147483647, %v54
    %v240 = vsel %vm60, %v238, 0.0
    %241 = vadd.xlane.f32.xlu0 %v240
    %v242 = vpop.xlane.xlu0 %241
    %v243 = vsel %vm60, %v239, 0.0
    %244 = vadd.xlane.f32.xlu0 %v243
    %v245 = vpop.xlane.xlu0 %244
    %vm246 = vcmp.gt.f32.partialorder %v242, 0.0
    %vm247 = vcmp.gt.f32.partialorder %v245, 0.0
    %v248 = vsel %vm246, 1, 0
    %v249 = vsel %vm247, 1, 0
    %v250 = vcvt.s32.f32 %v248
    %v251 = vcvt.s32.f32 %v249
    %vm252 = vcmask 64512
    %v254 = vsel %vm252, %v50, 0
    %256 = vmatprep.subr.mxu0 0.0
    %257 = vmatpush1.msra.mxu0 %v48
    %258 = vmatprep.subr.mxu0 0.0
    %259 = vmatpush1.msra.mxu0 0.0
    %260 = vmatprep.subr.mxu0 0.0
    %261 = vmatpush1.msra.mxu0 0.0
    %262 = vmatprep.subr.mxu0 0.0
    %263 = vmatpush1.msra.mxu0 0.0
    %264 = vmatprep.subr.mxu0 0.0
    %265 = vmatpush1.msra.mxu0 0.0
    %266 = vmatprep.subr.mxu0 0.0
    %267 = vmatpush1.msra.mxu0 0.0
    %268 = vmatprep.subr.mxu0 0.0
    %269 = vmatpush1.msra.mxu0 0.0
    %270 = vmatprep.subr.mxu0 0.0
    %271 = vmatpush1.msra.mxu0 0.0
    %272 = vmatprep.subr.mxu0 0.0
    %273 = vmatpush1.msra.mxu0 0.0
    %274 = vmatprep.subr.mxu0 0.0
    %275 = vmatpush1.msra.mxu0 0.0
    %276 = vmatprep.subr.mxu0 0.0
    %277 = vmatpush1.msra.mxu0 0.0
    %278 = vmatprep.subr.mxu0 0.0
    %279 = vmatpush1.msra.mxu0 0.0
    %280 = vmatprep.subr.mxu0 0.0
    %281 = vmatpush1.msra.mxu0 0.0
    %282 = vmatprep.subr.mxu0 0.0
    %283 = vmatpush1.msra.mxu0 0.0
    %284 = vmatprep.subr.mxu0 0.0
    %285 = vmatpush1.msra.mxu0 0.0
    %286 = vmatprep.subr.mxu0 0.0
    %287 = vmatpush1.msra.mxu0 0.0
    %288 = vmatprep.subr.mxu0 0.0
    %289 = vmatpush1.msra.mxu0 0.0
    %290 = vmatprep.subr.mxu0 0.0
    %291 = vmatpush1.msra.mxu0 0.0
    %292 = vmatprep.subr.mxu0 0.0
    %293 = vmatpush1.msra.mxu0 0.0
    %294 = vmatprep.subr.mxu0 0.0
    %295 = vmatpush1.msra.mxu0 0.0
    %296 = vmatprep.subr.mxu0 0.0
    %297 = vmatpush1.msra.mxu0 0.0
    %298 = vmatprep.subr.mxu0 0.0
    %299 = vmatpush1.msra.mxu0 0.0
    %300 = vmatprep.subr.mxu0 0.0
    %301 = vmatpush1.msra.mxu0 0.0
    %302 = vmatprep.subr.mxu0 0.0
    %303 = vmatpush1.msra.mxu0 0.0
    %304 = vmatprep.subr.mxu0 0.0
    %305 = vmatpush1.msra.mxu0 0.0
    %306 = vmatprep.subr.mxu0 0.0
    %307 = vmatpush1.msra.mxu0 0.0
    %308 = vmatprep.subr.mxu0 0.0
    %309 = vmatpush1.msra.mxu0 0.0
    %310 = vmatprep.subr.mxu0 0.0
    %311 = vmatpush1.msra.mxu0 0.0
    %312 = vmatprep.subr.mxu0 0.0
    %313 = vmatpush1.msra.mxu0 0.0
    %314 = vmatprep.subr.mxu0 0.0
    %315 = vmatpush1.msra.mxu0 0.0
    %316 = vmatprep.subr.mxu0 0.0
    %317 = vmatpush1.msra.mxu0 0.0
    %318 = vmatprep.subr.mxu0 0.0
    %319 = vmatpush1.msra.mxu0 0.0
    %320 = vmatprep.mubr.f32.mxu0 0.0
    %321 = vmatmul.mubr.f32.gmra.mrb[0].mxu0 %v254
    %v322 = vpop.f32.mrb[0].mxu0
    %v323 = vadd.f32 0.0, %v322
    %v324 = vpop.f32.mrb[0].mxu0
    %325 = vdwg.mxu0
    %v327 = vsel %vm252, %v51, 0
    %329 = vmatprep.subr.mxu0 0.0
    %330 = vmatpush1.msra.mxu0 %v49
    %331 = vmatprep.subr.mxu0 0.0
    %332 = vmatpush1.msra.mxu0 0.0
    %333 = vmatprep.subr.mxu0 0.0
    %334 = vmatpush1.msra.mxu0 0.0
    %335 = vmatprep.subr.mxu0 0.0
    %336 = vmatpush1.msra.mxu0 0.0
    %337 = vmatprep.subr.mxu0 0.0
    %338 = vmatpush1.msra.mxu0 0.0
    %339 = vmatprep.subr.mxu0 0.0
    %340 = vmatpush1.msra.mxu0 0.0
    %341 = vmatprep.subr.mxu0 0.0
    %342 = vmatpush1.msra.mxu0 0.0
    %343 = vmatprep.subr.mxu0 0.0
    %344 = vmatpush1.msra.mxu0 0.0
    %345 = vmatprep.subr.mxu0 0.0
    %346 = vmatpush1.msra.mxu0 0.0
    %347 = vmatprep.subr.mxu0 0.0
    %348 = vmatpush1.msra.mxu0 0.0
    %349 = vmatprep.subr.mxu0 0.0
    %350 = vmatpush1.msra.mxu0 0.0
    %351 = vmatprep.subr.mxu0 0.0
    %352 = vmatpush1.msra.mxu0 0.0
    %353 = vmatprep.subr.mxu0 0.0
    %354 = vmatpush1.msra.mxu0 0.0
    %355 = vmatprep.subr.mxu0 0.0
    %356 = vmatpush1.msra.mxu0 0.0
    %357 = vmatprep.subr.mxu0 0.0
    %358 = vmatpush1.msra.mxu0 0.0
    %359 = vmatprep.subr.mxu0 0.0
    %360 = vmatpush1.msra.mxu0 0.0
    %361 = vmatprep.subr.mxu0 0.0
    %362 = vmatpush1.msra.mxu0 0.0
    %363 = vmatprep.subr.mxu0 0.0
    %364 = vmatpush1.msra.mxu0 0.0
    %365 = vmatprep.subr.mxu0 0.0
    %366 = vmatpush1.msra.mxu0 0.0
    %367 = vmatprep.subr.mxu0 0.0
    %368 = vmatpush1.msra.mxu0 0.0
    %369 = vmatprep.subr.mxu0 0.0
    %370 = vmatpush1.msra.mxu0 0.0
    %371 = vmatprep.subr.mxu0 0.0
    %372 = vmatpush1.msra.mxu0 0.0
    %373 = vmatprep.subr.mxu0 0.0
    %374 = vmatpush1.msra.mxu0 0.0
    %375 = vmatprep.subr.mxu0 0.0
    %376 = vmatpush1.msra.mxu0 0.0
    %377 = vmatprep.subr.mxu0 0.0
    %378 = vmatpush1.msra.mxu0 0.0
    %379 = vmatprep.subr.mxu0 0.0
    %380 = vmatpush1.msra.mxu0 0.0
    %381 = vmatprep.subr.mxu0 0.0
    %382 = vmatpush1.msra.mxu0 0.0
    %383 = vmatprep.subr.mxu0 0.0
    %384 = vmatpush1.msra.mxu0 0.0
    %385 = vmatprep.subr.mxu0 0.0
    %386 = vmatpush1.msra.mxu0 0.0
    %387 = vmatprep.subr.mxu0 0.0
    %388 = vmatpush1.msra.mxu0 0.0
    %389 = vmatprep.subr.mxu0 0.0
    %390 = vmatpush1.msra.mxu0 0.0
    %391 = vmatprep.subr.mxu0 0.0
    %392 = vmatpush1.msra.mxu0 0.0
    %393 = vmatprep.mubr.f32.mxu0 0.0
    %394 = vmatmul.mubr.f32.gmra.mrb[0].mxu0 %v327
    %v395 = vpop.f32.mrb[0].mxu0
    %v396 = vadd.f32 0.0, %v395
    %v397 = vpop.f32.mrb[0].mxu0
    %398 = vdwg.mxu0
    %v399 = vmul.f32 %v138, %v233
    %v400 = vmul.f32 %v222, %v237
    %403 = vrot.lane.b32.xlu0 %v233, 32
    %v404 = vpop.permute.xlu0 %403
    %405 = vrot.lane.b32.xlu0 %v237, 32
    %v406 = vpop.permute.xlu0 %405
    %411 = vrot.lane.b32.xlu0 %v399, 64
    %v412 = vpop.permute.xlu0 %411
    %413 = vrot.lane.b32.xlu0 %v400, 64
    %v414 = vpop.permute.xlu0 %413
    %vm417 = vcmask 261120
    %v418 = vsel %vm417, %v138, %v404
    %v419 = vsel %vm417, %v222, %v406
    %vm420 = vcmask 523264
    %v421 = vsel %vm420, %v418, %v412
    %v422 = vsel %vm420, %v419, %v414
    %v423 = vld [vmem:[%s5] sm:$0xff]
    %v424 = vld [vmem:[%s5 + $0x8] sm:$0xff]
    %v425 = vld [vmem:[%s5 + $0x10] sm:$0xff]
    %v426 = vld [vmem:[%s5 + $0x18] sm:$0xff]
    %v427 = vld [vmem:[%s5 + $0x20] sm:$0xff]
    %v428 = vld [vmem:[%s5 + $0x28] sm:$0xff]
    %v429 = vld [vmem:[%s5 + $0x30] sm:$0xff]
    %v430 = vld [vmem:[%s5 + $0x38] sm:$0xff]
    %v431 = vld [vmem:[%s5 + $0x40] sm:$0xff]
    %v432 = vld [vmem:[%s5 + $0x48] sm:$0xff]
    %v433 = vld [vmem:[%s5 + $0x50] sm:$0xff]
    %v434 = vld [vmem:[%s5 + $0x58] sm:$0xff]
    %v435 = vld [vmem:[%s6] sm:$0x1]
    %v437 = vlaneseq
    %v438 = vshrl.u32 %v437, 7
    %v439 = vsub.s32 0, %v438
    %v440 = vrot.slane %v435, %v439
    %vm442 = vcmask 785408
    %v444 = vsel %vm442, %v421, 0
    %v447 = vsel %vm442, %v422, 0
    %449 = vmatprep.subr.mxu0 0.0
    %450 = vmatpush1.msra.mxu0 %v423
    %451 = vmatprep.subr.mxu0 0.0
    %452 = vmatpush1.msra.mxu0 %v424
    %453 = vmatprep.subr.mxu0 0.0
    %454 = vmatpush1.msra.mxu0 %v425
    %455 = vmatprep.subr.mxu0 0.0
    %456 = vmatpush1.msra.mxu0 %v426
    %457 = vmatprep.subr.mxu0 0.0
    %458 = vmatpush1.msra.mxu0 %v427
    %459 = vmatprep.subr.mxu0 0.0
    %460 = vmatpush1.msra.mxu0 %v428
    %461 = vmatprep.subr.mxu0 0.0
    %462 = vmatpush1.msra.mxu0 %v429
    %463 = vmatprep.subr.mxu0 0.0
    %464 = vmatpush1.msra.mxu0 %v430
    %465 = vmatprep.subr.mxu0 0.0
    %466 = vmatpush1.msra.mxu0 %v431
    %467 = vmatprep.subr.mxu0 0.0
    %468 = vmatpush1.msra.mxu0 %v432
    %469 = vmatprep.subr.mxu0 0.0
    %470 = vmatpush1.msra.mxu0 %v433
    %471 = vmatprep.subr.mxu0 0.0
    %472 = vmatpush1.msra.mxu0 %v434
    %473 = vmatprep.subr.mxu0 0.0
    %474 = vmatpush1.msra.mxu0 0.0
    %475 = vmatprep.subr.mxu0 0.0
    %476 = vmatpush1.msra.mxu0 0.0
    %477 = vmatprep.subr.mxu0 0.0
    %478 = vmatpush1.msra.mxu0 0.0
    %479 = vmatprep.subr.mxu0 0.0
    %480 = vmatpush1.msra.mxu0 0.0
    %481 = vmatprep.subr.mxu0 0.0
    %482 = vmatpush1.msra.mxu0 0.0
    %483 = vmatprep.subr.mxu0 0.0
    %484 = vmatpush1.msra.mxu0 0.0
    %485 = vmatprep.subr.mxu0 0.0
    %486 = vmatpush1.msra.mxu0 0.0
    %487 = vmatprep.subr.mxu0 0.0
    %488 = vmatpush1.msra.mxu0 0.0
    %489 = vmatprep.subr.mxu0 0.0
    %490 = vmatpush1.msra.mxu0 0.0
    %491 = vmatprep.subr.mxu0 0.0
    %492 = vmatpush1.msra.mxu0 0.0
    %493 = vmatprep.subr.mxu0 0.0
    %494 = vmatpush1.msra.mxu0 0.0
    %495 = vmatprep.subr.mxu0 0.0
    %496 = vmatpush1.msra.mxu0 0.0
    %497 = vmatprep.subr.mxu0 0.0
    %498 = vmatpush1.msra.mxu0 0.0
    %499 = vmatprep.subr.mxu0 0.0
    %500 = vmatpush1.msra.mxu0 0.0
    %501 = vmatprep.subr.mxu0 0.0
    %502 = vmatpush1.msra.mxu0 0.0
    %503 = vmatprep.subr.mxu0 0.0
    %504 = vmatpush1.msra.mxu0 0.0
    %505 = vmatprep.subr.mxu0 0.0
    %506 = vmatpush1.msra.mxu0 0.0
    %507 = vmatprep.subr.mxu0 0.0
    %508 = vmatpush1.msra.mxu0 0.0
    %509 = vmatprep.subr.mxu0 0.0
    %510 = vmatpush1.msra.mxu0 0.0
    %511 = vmatprep.subr.mxu0 0.0
    %512 = vmatpush1.msra.mxu0 0.0
    %513 = vmatprep.mubr.f32.mxu0 0.0
    %514 = vmatmul.mubr.f32.gmra.mrb[0].mxu0 %v444
    %v515 = vpop.f32.mrb[0].mxu0
    %v516 = vadd.f32 %v440, %v515
    %v517 = vpop.f32.mrb[0].mxu0
    %518 = vmatprep.mubr.f32.mxu0 0.0
    %519 = vmatmul.mubr.f32.gmra.mrb[0].mxu0 %v447
    %v520 = vpop.f32.mrb[0].mxu0
    %v521 = vadd.f32 %v440, %v520
    %v522 = vpop.f32.mrb[0].mxu0
    %523 = vdwg.mxu0
    %v524 = vmul.f32 %v516, %v250
    %v525 = vmul.f32 %v521, %v251
    %v527 = vsel %vm417, %v524, 0
    %v530 = vsel %vm417, %v323, 0
    %532 = vmatprep.subr.mxu0 0.0
    %533 = vmatpush1.xpose.msra.mxu0 %v530
    %534 = vmatprep.subr.mxu0 0.0
    %535 = vmatpush1.xpose.msra.mxu0 0.0
    %536 = vmatprep.subr.mxu0 0.0
    %537 = vmatpush1.xpose.msra.mxu0 0.0
    %538 = vmatprep.subr.mxu0 0.0
    %539 = vmatpush1.xpose.msra.mxu0 0.0
    %540 = vmatprep.subr.mxu0 0.0
    %541 = vmatpush1.xpose.msra.mxu0 0.0
    %542 = vmatprep.subr.mxu0 0.0
    %543 = vmatpush1.xpose.msra.mxu0 0.0
    %544 = vmatprep.subr.mxu0 0.0
    %545 = vmatpush1.xpose.msra.mxu0 0.0
    %546 = vmatprep.subr.mxu0 0.0
    %547 = vmatpush1.xpose.msra.mxu0 0.0
    %548 = vmatprep.subr.mxu0 0.0
    %549 = vmatpush1.xpose.msra.mxu0 0.0
    %550 = vmatprep.subr.mxu0 0.0
    %551 = vmatpush1.xpose.msra.mxu0 0.0
    %552 = vmatprep.subr.mxu0 0.0
    %553 = vmatpush1.xpose.msra.mxu0 0.0
    %554 = vmatprep.subr.mxu0 0.0
    %555 = vmatpush1.xpose.msra.mxu0 0.0
    %556 = vmatprep.subr.mxu0 0.0
    %557 = vmatpush1.xpose.msra.mxu0 0.0
    %558 = vmatprep.subr.mxu0 0.0
    %559 = vmatpush1.xpose.msra.mxu0 0.0
    %560 = vmatprep.subr.mxu0 0.0
    %561 = vmatpush1.xpose.msra.mxu0 0.0
    %562 = vmatprep.subr.mxu0 0.0
    %563 = vmatpush1.xpose.msra.mxu0 0.0
    %564 = vmatprep.subr.mxu0 0.0
    %565 = vmatpush1.xpose.msra.mxu0 0.0
    %566 = vmatprep.subr.mxu0 0.0
    %567 = vmatpush1.xpose.msra.mxu0 0.0
    %568 = vmatprep.subr.mxu0 0.0
    %569 = vmatpush1.xpose.msra.mxu0 0.0
    %570 = vmatprep.subr.mxu0 0.0
    %571 = vmatpush1.xpose.msra.mxu0 0.0
    %572 = vmatprep.subr.mxu0 0.0
    %573 = vmatpush1.xpose.msra.mxu0 0.0
    %574 = vmatprep.subr.mxu0 0.0
    %575 = vmatpush1.xpose.msra.mxu0 0.0
    %576 = vmatprep.subr.mxu0 0.0
    %577 = vmatpush1.xpose.msra.mxu0 0.0
    %578 = vmatprep.subr.mxu0 0.0
    %579 = vmatpush1.xpose.msra.mxu0 0.0
    %580 = vmatprep.subr.mxu0 0.0
    %581 = vmatpush1.xpose.msra.mxu0 0.0
    %582 = vmatprep.subr.mxu0 0.0
    %583 = vmatpush1.xpose.msra.mxu0 0.0
    %584 = vmatprep.subr.mxu0 0.0
    %585 = vmatpush1.xpose.msra.mxu0 0.0
    %586 = vmatprep.subr.mxu0 0.0
    %587 = vmatpush1.xpose.msra.mxu0 0.0
    %588 = vmatprep.subr.mxu0 0.0
    %589 = vmatpush1.xpose.msra.mxu0 0.0
    %590 = vmatprep.subr.mxu0 0.0
    %591 = vmatpush1.xpose.msra.mxu0 0.0
    %592 = vmatprep.subr.mxu0 0.0
    %593 = vmatpush1.xpose.msra.mxu0 0.0
    %594 = vmatprep.subr.mxu0 0.0
    %595 = vmatpush1.xpose.msra.mxu0 0.0
    %596 = vmatprep.mubr.f32.mxu0 0.0
    %597 = vmatmul.mubr.f32.gmra.mrb[0].mxu0 %v527
    %v598 = vpop.f32.mrb[0].mxu0
    %v599 = vadd.f32 0.0, %v598
    %v600 = vpop.f32.mrb[0].mxu0
    %601 = vdwg.mxu0
    %v603 = vsel %vm417, %v525, 0
    %v606 = vsel %vm417, %v396, 0
    %608 = vmatprep.subr.mxu0 0.0
    %609 = vmatpush1.xpose.msra.mxu0 %v606
    %610 = vmatprep.subr.mxu0 0.0
    %611 = vmatpush1.xpose.msra.mxu0 0.0
    %612 = vmatprep.subr.mxu0 0.0
    %613 = vmatpush1.xpose.msra.mxu0 0.0
    %614 = vmatprep.subr.mxu0 0.0
    %615 = vmatpush1.xpose.msra.mxu0 0.0
    %616 = vmatprep.subr.mxu0 0.0
    %617 = vmatpush1.xpose.msra.mxu0 0.0
    %618 = vmatprep.subr.mxu0 0.0
    %619 = vmatpush1.xpose.msra.mxu0 0.0
    %620 = vmatprep.subr.mxu0 0.0
    %621 = vmatpush1.xpose.msra.mxu0 0.0
    %622 = vmatprep.subr.mxu0 0.0
    %623 = vmatpush1.xpose.msra.mxu0 0.0
    %624 = vmatprep.subr.mxu0 0.0
    %625 = vmatpush1.xpose.msra.mxu0 0.0
    %626 = vmatprep.subr.mxu0 0.0
    %627 = vmatpush1.xpose.msra.mxu0 0.0
    %628 = vmatprep.subr.mxu0 0.0
    %629 = vmatpush1.xpose.msra.mxu0 0.0
    %630 = vmatprep.subr.mxu0 0.0
    %631 = vmatpush1.xpose.msra.mxu0 0.0
    %632 = vmatprep.subr.mxu0 0.0
    %633 = vmatpush1.xpose.msra.mxu0 0.0
    %634 = vmatprep.subr.mxu0 0.0
    %635 = vmatpush1.xpose.msra.mxu0 0.0
    %636 = vmatprep.subr.mxu0 0.0
    %637 = vmatpush1.xpose.msra.mxu0 0.0
    %638 = vmatprep.subr.mxu0 0.0
    %639 = vmatpush1.xpose.msra.mxu0 0.0
    %640 = vmatprep.subr.mxu0 0.0
    %641 = vmatpush1.xpose.msra.mxu0 0.0
    %642 = vmatprep.subr.mxu0 0.0
    %643 = vmatpush1.xpose.msra.mxu0 0.0
    %644 = vmatprep.subr.mxu0 0.0
    %645 = vmatpush1.xpose.msra.mxu0 0.0
    %646 = vmatprep.subr.mxu0 0.0
    %647 = vmatpush1.xpose.msra.mxu0 0.0
    %648 = vmatprep.subr.mxu0 0.0
    %649 = vmatpush1.xpose.msra.mxu0 0.0
    %650 = vmatprep.subr.mxu0 0.0
    %651 = vmatpush1.xpose.msra.mxu0 0.0
    %652 = vmatprep.subr.mxu0 0.0
    %653 = vmatpush1.xpose.msra.mxu0 0.0
    %654 = vmatprep.subr.mxu0 0.0
    %655 = vmatpush1.xpose.msra.mxu0 0.0
    %656 = vmatprep.subr.mxu0 0.0
    %657 = vmatpush1.xpose.msra.mxu0 0.0
    %658 = vmatprep.subr.mxu0 0.0
    %659 = vmatpush1.xpose.msra.mxu0 0.0
    %660 = vmatprep.subr.mxu0 0.0
    %661 = vmatpush1.xpose.msra.mxu0 0.0
    %662 = vmatprep.subr.mxu0 0.0
    %663 = vmatpush1.xpose.msra.mxu0 0.0
    %664 = vmatprep.subr.mxu0 0.0
    %665 = vmatpush1.xpose.msra.mxu0 0.0
    %666 = vmatprep.subr.mxu0 0.0
    %667 = vmatpush1.xpose.msra.mxu0 0.0
    %668 = vmatprep.subr.mxu0 0.0
    %669 = vmatpush1.xpose.msra.mxu0 0.0
    %670 = vmatprep.subr.mxu0 0.0
    %671 = vmatpush1.xpose.msra.mxu0 0.0
    %672 = vmatprep.mubr.f32.mxu0 0.0
    %673 = vmatmul.mubr.f32.gmra.mrb[0].mxu0 %v603
    %v674 = vpop.f32.mrb[0].mxu0
    %v675 = vadd.f32 0.0, %v674
    %v676 = vpop.f32.mrb[0].mxu0
    %677 = vdwg.mxu0
    %678 = vmatprep.subr.mxu0 0.0
    %679 = vmatpush1.xpose.msra.mxu0 %v527
    %680 = vmatprep.subr.mxu0 0.0
    %681 = vmatpush1.xpose.msra.mxu0 0.0
    %682 = vmatprep.subr.mxu0 0.0
    %683 = vmatpush1.xpose.msra.mxu0 0.0
    %684 = vmatprep.subr.mxu0 0.0
    %685 = vmatpush1.xpose.msra.mxu0 0.0
    %686 = vmatprep.subr.mxu0 0.0
    %687 = vmatpush1.xpose.msra.mxu0 0.0
    %688 = vmatprep.subr.mxu0 0.0
    %689 = vmatpush1.xpose.msra.mxu0 0.0
    %690 = vmatprep.subr.mxu0 0.0
    %691 = vmatpush1.xpose.msra.mxu0 0.0
    %692 = vmatprep.subr.mxu0 0.0
    %693 = vmatpush1.xpose.msra.mxu0 0.0
    %694 = vmatprep.subr.mxu0 0.0
    %695 = vmatpush1.xpose.msra.mxu0 0.0
    %696 = vmatprep.subr.mxu0 0.0
    %697 = vmatpush1.xpose.msra.mxu0 0.0
    %698 = vmatprep.subr.mxu0 0.0
    %699 = vmatpush1.xpose.msra.mxu0 0.0
    %700 = vmatprep.subr.mxu0 0.0
    %701 = vmatpush1.xpose.msra.mxu0 0.0
    %702 = vmatprep.subr.mxu0 0.0
    %703 = vmatpush1.xpose.msra.mxu0 0.0
    %704 = vmatprep.subr.mxu0 0.0
    %705 = vmatpush1.xpose.msra.mxu0 0.0
    %706 = vmatprep.subr.mxu0 0.0
    %707 = vmatpush1.xpose.msra.mxu0 0.0
    %708 = vmatprep.subr.mxu0 0.0
    %709 = vmatpush1.xpose.msra.mxu0 0.0
    %710 = vmatprep.subr.mxu0 0.0
    %711 = vmatpush1.xpose.msra.mxu0 0.0
    %712 = vmatprep.subr.mxu0 0.0
    %713 = vmatpush1.xpose.msra.mxu0 0.0
    %714 = vmatprep.subr.mxu0 0.0
    %715 = vmatpush1.xpose.msra.mxu0 0.0
    %716 = vmatprep.subr.mxu0 0.0
    %717 = vmatpush1.xpose.msra.mxu0 0.0
    %718 = vmatprep.subr.mxu0 0.0
    %719 = vmatpush1.xpose.msra.mxu0 0.0
    %720 = vmatprep.subr.mxu0 0.0
    %721 = vmatpush1.xpose.msra.mxu0 0.0
    %722 = vmatprep.subr.mxu0 0.0
    %723 = vmatpush1.xpose.msra.mxu0 0.0
    %724 = vmatprep.subr.mxu0 0.0
    %725 = vmatpush1.xpose.msra.mxu0 0.0
    %726 = vmatprep.subr.mxu0 0.0
    %727 = vmatpush1.xpose.msra.mxu0 0.0
    %728 = vmatprep.subr.mxu0 0.0
    %729 = vmatpush1.xpose.msra.mxu0 0.0
    %730 = vmatprep.subr.mxu0 0.0
    %731 = vmatpush1.xpose.msra.mxu0 0.0
    %732 = vmatprep.subr.mxu0 0.0
    %733 = vmatpush1.xpose.msra.mxu0 0.0
    %734 = vmatprep.subr.mxu0 0.0
    %735 = vmatpush1.xpose.msra.mxu0 0.0
    %736 = vmatprep.subr.mxu0 0.0
    %737 = vmatpush1.xpose.msra.mxu0 0.0
    %738 = vmatprep.subr.mxu0 0.0
    %739 = vmatpush1.xpose.msra.mxu0 0.0
    %740 = vmatprep.subr.mxu0 0.0
    %741 = vmatpush1.xpose.msra.mxu0 0.0
    %742 = vmatprep.mubr.f32.mxu0 0.0
    %743 = vmatmul.mubr.f32.gmra.mrb[0].mxu0 %v530
    %v744 = vpop.f32.mrb[0].mxu0
    %v745 = vadd.f32 0.0, %v744
    %v746 = vpop.f32.mrb[0].mxu0
    %747 = vdwg.mxu0
    %748 = vmatprep.subr.mxu0 0.0
    %749 = vmatpush1.xpose.msra.mxu0 %v603
    %750 = vmatprep.subr.mxu0 0.0
    %751 = vmatpush1.xpose.msra.mxu0 0.0
    %752 = vmatprep.subr.mxu0 0.0
    %753 = vmatpush1.xpose.msra.mxu0 0.0
    %754 = vmatprep.subr.mxu0 0.0
    %755 = vmatpush1.xpose.msra.mxu0 0.0
    %756 = vmatprep.subr.mxu0 0.0
    %757 = vmatpush1.xpose.msra.mxu0 0.0
    %758 = vmatprep.subr.mxu0 0.0
    %759 = vmatpush1.xpose.msra.mxu0 0.0
    %760 = vmatprep.subr.mxu0 0.0
    %761 = vmatpush1.xpose.msra.mxu0 0.0
    %762 = vmatprep.subr.mxu0 0.0
    %763 = vmatpush1.xpose.msra.mxu0 0.0
    %764 = vmatprep.subr.mxu0 0.0
    %765 = vmatpush1.xpose.msra.mxu0 0.0
    %766 = vmatprep.subr.mxu0 0.0
    %767 = vmatpush1.xpose.msra.mxu0 0.0
    %768 = vmatprep.subr.mxu0 0.0
    %769 = vmatpush1.xpose.msra.mxu0 0.0
    %770 = vmatprep.subr.mxu0 0.0
    %771 = vmatpush1.xpose.msra.mxu0 0.0
    %772 = vmatprep.subr.mxu0 0.0
    %773 = vmatpush1.xpose.msra.mxu0 0.0
    %774 = vmatprep.subr.mxu0 0.0
    %775 = vmatpush1.xpose.msra.mxu0 0.0
    %776 = vmatprep.subr.mxu0 0.0
    %777 = vmatpush1.xpose.msra.mxu0 0.0
    %778 = vmatprep.subr.mxu0 0.0
    %779 = vmatpush1.xpose.msra.mxu0 0.0
    %780 = vmatprep.subr.mxu0 0.0
    %781 = vmatpush1.xpose.msra.mxu0 0.0
    %782 = vmatprep.subr.mxu0 0.0
    %783 = vmatpush1.xpose.msra.mxu0 0.0
    %784 = vmatprep.subr.mxu0 0.0
    %785 = vmatpush1.xpose.msra.mxu0 0.0
    %786 = vmatprep.subr.mxu0 0.0
    %787 = vmatpush1.xpose.msra.mxu0 0.0
    %788 = vmatprep.subr.mxu0 0.0
    %789 = vmatpush1.xpose.msra.mxu0 0.0
    %790 = vmatprep.subr.mxu0 0.0
    %791 = vmatpush1.xpose.msra.mxu0 0.0
    %792 = vmatprep.subr.mxu0 0.0
    %793 = vmatpush1.xpose.msra.mxu0 0.0
    %794 = vmatprep.subr.mxu0 0.0
    %795 = vmatpush1.xpose.msra.mxu0 0.0
    %796 = vmatprep.subr.mxu0 0.0
    %797 = vmatpush1.xpose.msra.mxu0 0.0
    %798 = vmatprep.subr.mxu0 0.0
    %799 = vmatpush1.xpose.msra.mxu0 0.0
    %800 = vmatprep.subr.mxu0 0.0
    %801 = vmatpush1.xpose.msra.mxu0 0.0
    %802 = vmatprep.subr.mxu0 0.0
    %803 = vmatpush1.xpose.msra.mxu0 0.0
    %804 = vmatprep.subr.mxu0 0.0
    %805 = vmatpush1.xpose.msra.mxu0 0.0
    %806 = vmatprep.subr.mxu0 0.0
    %807 = vmatpush1.xpose.msra.mxu0 0.0
    %808 = vmatprep.subr.mxu0 0.0
    %809 = vmatpush1.xpose.msra.mxu0 0.0
    %810 = vmatprep.subr.mxu0 0.0
    %811 = vmatpush1.xpose.msra.mxu0 0.0
    %812 = vmatprep.mubr.f32.mxu0 0.0
    %813 = vmatmul.mubr.f32.gmra.mrb[0].mxu0 %v606
    %v814 = vpop.f32.mrb[0].mxu0
    %v815 = vadd.f32 0.0, %v814
    %v816 = vpop.f32.mrb[0].mxu0
    %817 = vdwg.mxu0
    %v818 = vand.u32 2147483647, %v599
    %v819 = vand.u32 2147483647, %v675
    %v820 = vsel %vm252, %v818, 0.0
    %821 = vadd.xlane.f32.xlu0 %v820
    %v822 = vpop.xlane.xlu0 %821
    %v823 = vsel %vm252, %v819, 0.0
    %824 = vadd.xlane.f32.xlu0 %v823
    %v825 = vpop.xlane.xlu0 %824
    %v826 = vmax.f32 %v822, 1e-12
    %v827 = vmax.f32 %v825, 1e-12
    %v828 = vrcp.pop %v826
    %v829 = vmul.f32 %v599, %v828
    %v830 = vrcp.pop %v827
    %v831 = vmul.f32 %v675, %v830
    %v832 = vand.u32 2147483647, %v745
    %v833 = vand.u32 2147483647, %v815
    %v834 = vsel %vm252, %v832, 0.0
    %835 = vadd.xlane.f32.xlu0 %v834
    %v836 = vpop.xlane.xlu0 %835
    %v837 = vsel %vm252, %v833, 0.0
    %838 = vadd.xlane.f32.xlu0 %v837
    %v839 = vpop.xlane.xlu0 %838
    %v840 = vmax.f32 %v836, 1e-12
    %v841 = vmax.f32 %v839, 1e-12
    %v842 = vrcp.pop %v840
    %v843 = vmul.f32 %v745, %v842
    %v844 = vrcp.pop %v841
    %v845 = vmul.f32 %v815, %v844
    %v847 = vsel %vm252, %v829, 0
    %849 = vmatprep.subr.mxu0 0.0
    %850 = vmatpush1.msra.mxu0 %v323
    %851 = vmatprep.subr.mxu0 0.0
    %852 = vmatpush1.msra.mxu0 0.0
    %853 = vmatprep.subr.mxu0 0.0
    %854 = vmatpush1.msra.mxu0 0.0
    %855 = vmatprep.subr.mxu0 0.0
    %856 = vmatpush1.msra.mxu0 0.0
    %857 = vmatprep.subr.mxu0 0.0
    %858 = vmatpush1.msra.mxu0 0.0
    %859 = vmatprep.subr.mxu0 0.0
    %860 = vmatpush1.msra.mxu0 0.0
    %861 = vmatprep.subr.mxu0 0.0
    %862 = vmatpush1.msra.mxu0 0.0
    %863 = vmatprep.subr.mxu0 0.0
    %864 = vmatpush1.msra.mxu0 0.0
    %865 = vmatprep.subr.mxu0 0.0
    %866 = vmatpush1.msra.mxu0 0.0
    %867 = vmatprep.subr.mxu0 0.0
    %868 = vmatpush1.msra.mxu0 0.0
    %869 = vmatprep.subr.mxu0 0.0
    %870 = vmatpush1.msra.mxu0 0.0
    %871 = vmatprep.subr.mxu0 0.0
    %872 = vmatpush1.msra.mxu0 0.0
    %873 = vmatprep.subr.mxu0 0.0
    %874 = vmatpush1.msra.mxu0 0.0
    %875 = vmatprep.subr.mxu0 0.0
    %876 = vmatpush1.msra.mxu0 0.0
    %877 = vmatprep.subr.mxu0 0.0
    %878 = vmatpush1.msra.mxu0 0.0
    %879 = vmatprep.subr.mxu0 0.0
    %880 = vmatpush1.msra.mxu0 0.0
    %881 = vmatprep.subr.mxu0 0.0
    %882 = vmatpush1.msra.mxu0 0.0
    %883 = vmatprep.subr.mxu0 0.0
    %884 = vmatpush1.msra.mxu0 0.0
    %885 = vmatprep.subr.mxu0 0.0
    %886 = vmatpush1.msra.mxu0 0.0
    %887 = vmatprep.subr.mxu0 0.0
    %888 = vmatpush1.msra.mxu0 0.0
    %889 = vmatprep.subr.mxu0 0.0
    %890 = vmatpush1.msra.mxu0 0.0
    %891 = vmatprep.subr.mxu0 0.0
    %892 = vmatpush1.msra.mxu0 0.0
    %893 = vmatprep.subr.mxu0 0.0
    %894 = vmatpush1.msra.mxu0 0.0
    %895 = vmatprep.subr.mxu0 0.0
    %896 = vmatpush1.msra.mxu0 0.0
    %897 = vmatprep.subr.mxu0 0.0
    %898 = vmatpush1.msra.mxu0 0.0
    %899 = vmatprep.subr.mxu0 0.0
    %900 = vmatpush1.msra.mxu0 0.0
    %901 = vmatprep.subr.mxu0 0.0
    %902 = vmatpush1.msra.mxu0 0.0
    %903 = vmatprep.subr.mxu0 0.0
    %904 = vmatpush1.msra.mxu0 0.0
    %905 = vmatprep.subr.mxu0 0.0
    %906 = vmatpush1.msra.mxu0 0.0
    %907 = vmatprep.subr.mxu0 0.0
    %908 = vmatpush1.msra.mxu0 0.0
    %909 = vmatprep.subr.mxu0 0.0
    %910 = vmatpush1.msra.mxu0 0.0
    %911 = vmatprep.subr.mxu0 0.0
    %912 = vmatpush1.msra.mxu0 0.0
    %913 = vmatprep.mubr.f32.mxu0 0.0
    %914 = vmatmul.mubr.f32.gmra.mrb[0].mxu0 %v847
    %v915 = vpop.f32.mrb[0].mxu0
    %v916 = vadd.f32 0.0, %v915
    %v917 = vpop.f32.mrb[0].mxu0
    %918 = vdwg.mxu0
    %v920 = vsel %vm252, %v831, 0
    %922 = vmatprep.subr.mxu0 0.0
    %923 = vmatpush1.msra.mxu0 %v396
    %924 = vmatprep.subr.mxu0 0.0
    %925 = vmatpush1.msra.mxu0 0.0
    %926 = vmatprep.subr.mxu0 0.0
    %927 = vmatpush1.msra.mxu0 0.0
    %928 = vmatprep.subr.mxu0 0.0
    %929 = vmatpush1.msra.mxu0 0.0
    %930 = vmatprep.subr.mxu0 0.0
    %931 = vmatpush1.msra.mxu0 0.0
    %932 = vmatprep.subr.mxu0 0.0
    %933 = vmatpush1.msra.mxu0 0.0
    %934 = vmatprep.subr.mxu0 0.0
    %935 = vmatpush1.msra.mxu0 0.0
    %936 = vmatprep.subr.mxu0 0.0
    %937 = vmatpush1.msra.mxu0 0.0
    %938 = vmatprep.subr.mxu0 0.0
    %939 = vmatpush1.msra.mxu0 0.0
    %940 = vmatprep.subr.mxu0 0.0
    %941 = vmatpush1.msra.mxu0 0.0
    %942 = vmatprep.subr.mxu0 0.0
    %943 = vmatpush1.msra.mxu0 0.0
    %944 = vmatprep.subr.mxu0 0.0
    %945 = vmatpush1.msra.mxu0 0.0
    %946 = vmatprep.subr.mxu0 0.0
    %947 = vmatpush1.msra.mxu0 0.0
    %948 = vmatprep.subr.mxu0 0.0
    %949 = vmatpush1.msra.mxu0 0.0
    %950 = vmatprep.subr.mxu0 0.0
    %951 = vmatpush1.msra.mxu0 0.0
    %952 = vmatprep.subr.mxu0 0.0
    %953 = vmatpush1.msra.mxu0 0.0
    %954 = vmatprep.subr.mxu0 0.0
    %955 = vmatpush1.msra.mxu0 0.0
    %956 = vmatprep.subr.mxu0 0.0
    %957 = vmatpush1.msra.mxu0 0.0
    %958 = vmatprep.subr.mxu0 0.0
    %959 = vmatpush1.msra.mxu0 0.0
    %960 = vmatprep.subr.mxu0 0.0
    %961 = vmatpush1.msra.mxu0 0.0
    %962 = vmatprep.subr.mxu0 0.0
    %963 = vmatpush1.msra.mxu0 0.0
    %964 = vmatprep.subr.mxu0 0.0
    %965 = vmatpush1.msra.mxu0 0.0
    %966 = vmatprep.subr.mxu0 0.0
    %967 = vmatpush1.msra.mxu0 0.0
    %968 = vmatprep.subr.mxu0 0.0
    %969 = vmatpush1.msra.mxu0 0.0
    %970 = vmatprep.subr.mxu0 0.0
    %971 = vmatpush1.msra.mxu0 0.0
    %972 = vmatprep.subr.mxu0 0.0
    %973 = vmatpush1.msra.mxu0 0.0
    %974 = vmatprep.subr.mxu0 0.0
    %975 = vmatpush1.msra.mxu0 0.0
    %976 = vmatprep.subr.mxu0 0.0
    %977 = vmatpush1.msra.mxu0 0.0
    %978 = vmatprep.subr.mxu0 0.0
    %979 = vmatpush1.msra.mxu0 0.0
    %980 = vmatprep.subr.mxu0 0.0
    %981 = vmatpush1.msra.mxu0 0.0
    %982 = vmatprep.subr.mxu0 0.0
    %983 = vmatpush1.msra.mxu0 0.0
    %984 = vmatprep.subr.mxu0 0.0
    %985 = vmatpush1.msra.mxu0 0.0
    %986 = vmatprep.mubr.f32.mxu0 0.0
    %987 = vmatmul.mubr.f32.gmra.mrb[0].mxu0 %v920
    %v988 = vpop.f32.mrb[0].mxu0
    %v989 = vadd.f32 0.0, %v988
    %v990 = vpop.f32.mrb[0].mxu0
    %991 = vdwg.mxu0
    %v993 = vsel %vm252, %v843, 0
    %995 = vmatprep.subr.mxu0 0.0
    %996 = vmatpush1.msra.mxu0 %v524
    %997 = vmatprep.subr.mxu0 0.0
    %998 = vmatpush1.msra.mxu0 0.0
    %999 = vmatprep.subr.mxu0 0.0
    %1000 = vmatpush1.msra.mxu0 0.0
    %1001 = vmatprep.subr.mxu0 0.0
    %1002 = vmatpush1.msra.mxu0 0.0
    %1003 = vmatprep.subr.mxu0 0.0
    %1004 = vmatpush1.msra.mxu0 0.0
    %1005 = vmatprep.subr.mxu0 0.0
    %1006 = vmatpush1.msra.mxu0 0.0
    %1007 = vmatprep.subr.mxu0 0.0
    %1008 = vmatpush1.msra.mxu0 0.0
    %1009 = vmatprep.subr.mxu0 0.0
    %1010 = vmatpush1.msra.mxu0 0.0
    %1011 = vmatprep.subr.mxu0 0.0
    %1012 = vmatpush1.msra.mxu0 0.0
    %1013 = vmatprep.subr.mxu0 0.0
    %1014 = vmatpush1.msra.mxu0 0.0
    %1015 = vmatprep.subr.mxu0 0.0
    %1016 = vmatpush1.msra.mxu0 0.0
    %1017 = vmatprep.subr.mxu0 0.0
    %1018 = vmatpush1.msra.mxu0 0.0
    %1019 = vmatprep.subr.mxu0 0.0
    %1020 = vmatpush1.msra.mxu0 0.0
    %1021 = vmatprep.subr.mxu0 0.0
    %1022 = vmatpush1.msra.mxu0 0.0
    %1023 = vmatprep.subr.mxu0 0.0
    %1024 = vmatpush1.msra.mxu0 0.0
    %1025 = vmatprep.subr.mxu0 0.0
    %1026 = vmatpush1.msra.mxu0 0.0
    %1027 = vmatprep.subr.mxu0 0.0
    %1028 = vmatpush1.msra.mxu0 0.0
    %1029 = vmatprep.subr.mxu0 0.0
    %1030 = vmatpush1.msra.mxu0 0.0
    %1031 = vmatprep.subr.mxu0 0.0
    %1032 = vmatpush1.msra.mxu0 0.0
    %1033 = vmatprep.subr.mxu0 0.0
    %1034 = vmatpush1.msra.mxu0 0.0
    %1035 = vmatprep.subr.mxu0 0.0
    %1036 = vmatpush1.msra.mxu0 0.0
    %1037 = vmatprep.subr.mxu0 0.0
    %1038 = vmatpush1.msra.mxu0 0.0
    %1039 = vmatprep.subr.mxu0 0.0
    %1040 = vmatpush1.msra.mxu0 0.0
    %1041 = vmatprep.subr.mxu0 0.0
    %1042 = vmatpush1.msra.mxu0 0.0
    %1043 = vmatprep.subr.mxu0 0.0
    %1044 = vmatpush1.msra.mxu0 0.0
    %1045 = vmatprep.subr.mxu0 0.0
    %1046 = vmatpush1.msra.mxu0 0.0
    %1047 = vmatprep.subr.mxu0 0.0
    %1048 = vmatpush1.msra.mxu0 0.0
    %1049 = vmatprep.subr.mxu0 0.0
    %1050 = vmatpush1.msra.mxu0 0.0
    %1051 = vmatprep.subr.mxu0 0.0
    %1052 = vmatpush1.msra.mxu0 0.0
    %1053 = vmatprep.subr.mxu0 0.0
    %1054 = vmatpush1.msra.mxu0 0.0
    %1055 = vmatprep.subr.mxu0 0.0
    %1056 = vmatpush1.msra.mxu0 0.0
    %1057 = vmatprep.subr.mxu0 0.0
    %1058 = vmatpush1.msra.mxu0 0.0
    %1059 = vmatprep.mubr.f32.mxu0 0.0
    %1060 = vmatmul.mubr.f32.gmra.mrb[0].mxu0 %v993
    %v1061 = vpop.f32.mrb[0].mxu0
    %v1062 = vadd.f32 0.0, %v1061
    %v1063 = vpop.f32.mrb[0].mxu0
    %1064 = vdwg.mxu0
    %v1066 = vsel %vm252, %v845, 0
    %1068 = vmatprep.subr.mxu0 0.0
    %1069 = vmatpush1.msra.mxu0 %v525
    %1070 = vmatprep.subr.mxu0 0.0
    %1071 = vmatpush1.msra.mxu0 0.0
    %1072 = vmatprep.subr.mxu0 0.0
    %1073 = vmatpush1.msra.mxu0 0.0
    %1074 = vmatprep.subr.mxu0 0.0
    %1075 = vmatpush1.msra.mxu0 0.0
    %1076 = vmatprep.subr.mxu0 0.0
    %1077 = vmatpush1.msra.mxu0 0.0
    %1078 = vmatprep.subr.mxu0 0.0
    %1079 = vmatpush1.msra.mxu0 0.0
    %1080 = vmatprep.subr.mxu0 0.0
    %1081 = vmatpush1.msra.mxu0 0.0
    %1082 = vmatprep.subr.mxu0 0.0
    %1083 = vmatpush1.msra.mxu0 0.0
    %1084 = vmatprep.subr.mxu0 0.0
    %1085 = vmatpush1.msra.mxu0 0.0
    %1086 = vmatprep.subr.mxu0 0.0
    %1087 = vmatpush1.msra.mxu0 0.0
    %1088 = vmatprep.subr.mxu0 0.0
    %1089 = vmatpush1.msra.mxu0 0.0
    %1090 = vmatprep.subr.mxu0 0.0
    %1091 = vmatpush1.msra.mxu0 0.0
    %1092 = vmatprep.subr.mxu0 0.0
    %1093 = vmatpush1.msra.mxu0 0.0
    %1094 = vmatprep.subr.mxu0 0.0
    %1095 = vmatpush1.msra.mxu0 0.0
    %1096 = vmatprep.subr.mxu0 0.0
    %1097 = vmatpush1.msra.mxu0 0.0
    %1098 = vmatprep.subr.mxu0 0.0
    %1099 = vmatpush1.msra.mxu0 0.0
    %1100 = vmatprep.subr.mxu0 0.0
    %1101 = vmatpush1.msra.mxu0 0.0
    %1102 = vmatprep.subr.mxu0 0.0
    %1103 = vmatpush1.msra.mxu0 0.0
    %1104 = vmatprep.subr.mxu0 0.0
    %1105 = vmatpush1.msra.mxu0 0.0
    %1106 = vmatprep.subr.mxu0 0.0
    %1107 = vmatpush1.msra.mxu0 0.0
    %1108 = vmatprep.subr.mxu0 0.0
    %1109 = vmatpush1.msra.mxu0 0.0
    %1110 = vmatprep.subr.mxu0 0.0
    %1111 = vmatpush1.msra.mxu0 0.0
    %1112 = vmatprep.subr.mxu0 0.0
    %1113 = vmatpush1.msra.mxu0 0.0
    %1114 = vmatprep.subr.mxu0 0.0
    %1115 = vmatpush1.msra.mxu0 0.0
    %1116 = vmatprep.subr.mxu0 0.0
    %1117 = vmatpush1.msra.mxu0 0.0
    %1118 = vmatprep.subr.mxu0 0.0
    %1119 = vmatpush1.msra.mxu0 0.0
    %1120 = vmatprep.subr.mxu0 0.0
    %1121 = vmatpush1.msra.mxu0 0.0
    %1122 = vmatprep.subr.mxu0 0.0
    %1123 = vmatpush1.msra.mxu0 0.0
    %1124 = vmatprep.subr.mxu0 0.0
    %1125 = vmatpush1.msra.mxu0 0.0
    %1126 = vmatprep.subr.mxu0 0.0
    %1127 = vmatpush1.msra.mxu0 0.0
    %1128 = vmatprep.subr.mxu0 0.0
    %1129 = vmatpush1.msra.mxu0 0.0
    %1130 = vmatprep.subr.mxu0 0.0
    %1131 = vmatpush1.msra.mxu0 0.0
    %1132 = vmatprep.mubr.f32.mxu0 0.0
    %1133 = vmatmul.mubr.f32.gmra.mrb[0].mxu0 %v1066
    %v1134 = vpop.f32.mrb[0].mxu0
    %v1135 = vadd.f32 0.0, %v1134
    %v1136 = vpop.f32.mrb[0].mxu0
    %1137 = vdwg.mxu0
    %v1139 = vsel %vm67, %v57, 0
    %1141 = vmatprep.subr.mxu0 0.0
    %1142 = vmatpush1.msra.mxu0 %v56
    %1143 = vmatprep.subr.mxu0 0.0
    %1144 = vmatpush1.msra.mxu0 %v1139
    %1145 = vmatprep.subr.mxu0 0.0
    %1146 = vmatpush1.msra.mxu0 0.0
    %1147 = vmatprep.subr.mxu0 0.0
    %1148 = vmatpush1.msra.mxu0 0.0
    %1149 = vmatprep.subr.mxu0 0.0
    %1150 = vmatpush1.msra.mxu0 0.0
    %1151 = vmatprep.subr.mxu0 0.0
    %1152 = vmatpush1.msra.mxu0 0.0
    %1153 = vmatprep.subr.mxu0 0.0
    %1154 = vmatpush1.msra.mxu0 0.0
    %1155 = vmatprep.subr.mxu0 0.0
    %1156 = vmatpush1.msra.mxu0 0.0
    %1157 = vmatprep.subr.mxu0 0.0
    %1158 = vmatpush1.msra.mxu0 0.0
    %1159 = vmatprep.subr.mxu0 0.0
    %1160 = vmatpush1.msra.mxu0 0.0
    %1161 = vmatprep.subr.mxu0 0.0
    %1162 = vmatpush1.msra.mxu0 0.0
    %1163 = vmatprep.subr.mxu0 0.0
    %1164 = vmatpush1.msra.mxu0 0.0
    %1165 = vmatprep.subr.mxu0 0.0
    %1166 = vmatpush1.msra.mxu0 0.0
    %1167 = vmatprep.subr.mxu0 0.0
    %1168 = vmatpush1.msra.mxu0 0.0
    %1169 = vmatprep.subr.mxu0 0.0
    %1170 = vmatpush1.msra.mxu0 0.0
    %1171 = vmatprep.subr.mxu0 0.0
    %1172 = vmatpush1.msra.mxu0 0.0
    %1173 = vmatprep.subr.mxu0 0.0
    %1174 = vmatpush1.msra.mxu0 0.0
    %1175 = vmatprep.subr.mxu0 0.0
    %1176 = vmatpush1.msra.mxu0 0.0
    %1177 = vmatprep.subr.mxu0 0.0
    %1178 = vmatpush1.msra.mxu0 0.0
    %1179 = vmatprep.subr.mxu0 0.0
    %1180 = vmatpush1.msra.mxu0 0.0
    %1181 = vmatprep.subr.mxu0 0.0
    %1182 = vmatpush1.msra.mxu0 0.0
    %1183 = vmatprep.subr.mxu0 0.0
    %1184 = vmatpush1.msra.mxu0 0.0
    %1185 = vmatprep.subr.mxu0 0.0
    %1186 = vmatpush1.msra.mxu0 0.0
    %1187 = vmatprep.subr.mxu0 0.0
    %1188 = vmatpush1.msra.mxu0 0.0
    %1189 = vmatprep.subr.mxu0 0.0
    %1190 = vmatpush1.msra.mxu0 0.0
    %1191 = vmatprep.subr.mxu0 0.0
    %1192 = vmatpush1.msra.mxu0 0.0
    %1193 = vmatprep.subr.mxu0 0.0
    %1194 = vmatpush1.msra.mxu0 0.0
    %1195 = vmatprep.subr.mxu0 0.0
    %1196 = vmatpush1.msra.mxu0 0.0
    %1197 = vmatprep.subr.mxu0 0.0
    %1198 = vmatpush1.msra.mxu0 0.0
    %1199 = vmatprep.subr.mxu0 0.0
    %1200 = vmatpush1.msra.mxu0 0.0
    %1201 = vmatprep.subr.mxu0 0.0
    %1202 = vmatpush1.msra.mxu0 0.0
    %1203 = vmatprep.subr.mxu0 0.0
    %1204 = vmatpush1.msra.mxu0 0.0
    %1205 = vmatprep.mubr.f32.mxu0 0.0
    %1206 = vmatmul.mubr.f32.gmra.mrb[0].mxu0 %v62
    %v1207 = vpop.f32.mrb[0].mxu0
    %v1208 = vadd.f32 0.0, %v1207
    %v1209 = vpop.f32.mrb[0].mxu0
    %1210 = vdwg.mxu0
    %v1212 = vsel %vm67, %v59, 0
    %1214 = vmatprep.subr.mxu0 0.0
    %1215 = vmatpush1.msra.mxu0 %v58
    %1216 = vmatprep.subr.mxu0 0.0
    %1217 = vmatpush1.msra.mxu0 %v1212
    %1218 = vmatprep.subr.mxu0 0.0
    %1219 = vmatpush1.msra.mxu0 0.0
    %1220 = vmatprep.subr.mxu0 0.0
    %1221 = vmatpush1.msra.mxu0 0.0
    %1222 = vmatprep.subr.mxu0 0.0
    %1223 = vmatpush1.msra.mxu0 0.0
    %1224 = vmatprep.subr.mxu0 0.0
    %1225 = vmatpush1.msra.mxu0 0.0
    %1226 = vmatprep.subr.mxu0 0.0
    %1227 = vmatpush1.msra.mxu0 0.0
    %1228 = vmatprep.subr.mxu0 0.0
    %1229 = vmatpush1.msra.mxu0 0.0
    %1230 = vmatprep.subr.mxu0 0.0
    %1231 = vmatpush1.msra.mxu0 0.0
    %1232 = vmatprep.subr.mxu0 0.0
    %1233 = vmatpush1.msra.mxu0 0.0
    %1234 = vmatprep.subr.mxu0 0.0
    %1235 = vmatpush1.msra.mxu0 0.0
    %1236 = vmatprep.subr.mxu0 0.0
    %1237 = vmatpush1.msra.mxu0 0.0
    %1238 = vmatprep.subr.mxu0 0.0
    %1239 = vmatpush1.msra.mxu0 0.0
    %1240 = vmatprep.subr.mxu0 0.0
    %1241 = vmatpush1.msra.mxu0 0.0
    %1242 = vmatprep.subr.mxu0 0.0
    %1243 = vmatpush1.msra.mxu0 0.0
    %1244 = vmatprep.subr.mxu0 0.0
    %1245 = vmatpush1.msra.mxu0 0.0
    %1246 = vmatprep.subr.mxu0 0.0
    %1247 = vmatpush1.msra.mxu0 0.0
    %1248 = vmatprep.subr.mxu0 0.0
    %1249 = vmatpush1.msra.mxu0 0.0
    %1250 = vmatprep.subr.mxu0 0.0
    %1251 = vmatpush1.msra.mxu0 0.0
    %1252 = vmatprep.subr.mxu0 0.0
    %1253 = vmatpush1.msra.mxu0 0.0
    %1254 = vmatprep.subr.mxu0 0.0
    %1255 = vmatpush1.msra.mxu0 0.0
    %1256 = vmatprep.subr.mxu0 0.0
    %1257 = vmatpush1.msra.mxu0 0.0
    %1258 = vmatprep.subr.mxu0 0.0
    %1259 = vmatpush1.msra.mxu0 0.0
    %1260 = vmatprep.subr.mxu0 0.0
    %1261 = vmatpush1.msra.mxu0 0.0
    %1262 = vmatprep.subr.mxu0 0.0
    %1263 = vmatpush1.msra.mxu0 0.0
    %1264 = vmatprep.subr.mxu0 0.0
    %1265 = vmatpush1.msra.mxu0 0.0
    %1266 = vmatprep.subr.mxu0 0.0
    %1267 = vmatpush1.msra.mxu0 0.0
    %1268 = vmatprep.subr.mxu0 0.0
    %1269 = vmatpush1.msra.mxu0 0.0
    %1270 = vmatprep.subr.mxu0 0.0
    %1271 = vmatpush1.msra.mxu0 0.0
    %1272 = vmatprep.subr.mxu0 0.0
    %1273 = vmatpush1.msra.mxu0 0.0
    %1274 = vmatprep.subr.mxu0 0.0
    %1275 = vmatpush1.msra.mxu0 0.0
    %1276 = vmatprep.subr.mxu0 0.0
    %1277 = vmatpush1.msra.mxu0 0.0
    %1278 = vmatprep.mubr.f32.mxu0 0.0
    %1279 = vmatmul.mubr.f32.gmra.mrb[0].mxu0 %v147
    %v1280 = vpop.f32.mrb[0].mxu0
    %v1281 = vadd.f32 0.0, %v1280
    %v1282 = vpop.f32.mrb[0].mxu0
    %1283 = vdwg.mxu0
    %v1285 = vsel %vm60, %v1208, 0
    %1287 = vmatprep.subr.mxu0 0.0
    %1288 = vmatpush1.msra.mxu0 %v44
    %1289 = vmatprep.subr.mxu0 0.0
    %1290 = vmatpush1.msra.mxu0 %v69
    %1291 = vmatprep.subr.mxu0 0.0
    %1292 = vmatpush1.msra.mxu0 0.0
    %1293 = vmatprep.subr.mxu0 0.0
    %1294 = vmatpush1.msra.mxu0 0.0
    %1295 = vmatprep.subr.mxu0 0.0
    %1296 = vmatpush1.msra.mxu0 0.0
    %1297 = vmatprep.subr.mxu0 0.0
    %1298 = vmatpush1.msra.mxu0 0.0
    %1299 = vmatprep.subr.mxu0 0.0
    %1300 = vmatpush1.msra.mxu0 0.0
    %1301 = vmatprep.subr.mxu0 0.0
    %1302 = vmatpush1.msra.mxu0 0.0
    %1303 = vmatprep.subr.mxu0 0.0
    %1304 = vmatpush1.msra.mxu0 0.0
    %1305 = vmatprep.subr.mxu0 0.0
    %1306 = vmatpush1.msra.mxu0 0.0
    %1307 = vmatprep.subr.mxu0 0.0
    %1308 = vmatpush1.msra.mxu0 0.0
    %1309 = vmatprep.subr.mxu0 0.0
    %1310 = vmatpush1.msra.mxu0 0.0
    %1311 = vmatprep.subr.mxu0 0.0
    %1312 = vmatpush1.msra.mxu0 0.0
    %1313 = vmatprep.subr.mxu0 0.0
    %1314 = vmatpush1.msra.mxu0 0.0
    %1315 = vmatprep.subr.mxu0 0.0
    %1316 = vmatpush1.msra.mxu0 0.0
    %1317 = vmatprep.subr.mxu0 0.0
    %1318 = vmatpush1.msra.mxu0 0.0
    %1319 = vmatprep.subr.mxu0 0.0
    %1320 = vmatpush1.msra.mxu0 0.0
    %1321 = vmatprep.subr.mxu0 0.0
    %1322 = vmatpush1.msra.mxu0 0.0
    %1323 = vmatprep.subr.mxu0 0.0
    %1324 = vmatpush1.msra.mxu0 0.0
    %1325 = vmatprep.subr.mxu0 0.0
    %1326 = vmatpush1.msra.mxu0 0.0
    %1327 = vmatprep.subr.mxu0 0.0
    %1328 = vmatpush1.msra.mxu0 0.0
    %1329 = vmatprep.subr.mxu0 0.0
    %1330 = vmatpush1.msra.mxu0 0.0
    %1331 = vmatprep.subr.mxu0 0.0
    %1332 = vmatpush1.msra.mxu0 0.0
    %1333 = vmatprep.subr.mxu0 0.0
    %1334 = vmatpush1.msra.mxu0 0.0
    %1335 = vmatprep.subr.mxu0 0.0
    %1336 = vmatpush1.msra.mxu0 0.0
    %1337 = vmatprep.subr.mxu0 0.0
    %1338 = vmatpush1.msra.mxu0 0.0
    %1339 = vmatprep.subr.mxu0 0.0
    %1340 = vmatpush1.msra.mxu0 0.0
    %1341 = vmatprep.subr.mxu0 0.0
    %1342 = vmatpush1.msra.mxu0 0.0
    %1343 = vmatprep.subr.mxu0 0.0
    %1344 = vmatpush1.msra.mxu0 0.0
    %1345 = vmatprep.subr.mxu0 0.0
    %1346 = vmatpush1.msra.mxu0 0.0
    %1347 = vmatprep.subr.mxu0 0.0
    %1348 = vmatpush1.msra.mxu0 0.0
    %1349 = vmatprep.subr.mxu0 0.0
    %1350 = vmatpush1.msra.mxu0 0.0
    %1351 = vmatprep.mubr.f32.mxu0 0.0
    %1352 = vmatmul.mubr.f32.gmra.mrb[0].mxu0 %v1285
    %v1353 = vpop.f32.mrb[0].mxu0
    %v1354 = vadd.f32 0.0, %v1353
    %v1355 = vpop.f32.mrb[0].mxu0
    %1356 = vdwg.mxu0
    %v1358 = vsel %vm60, %v1281, 0
    %1360 = vmatprep.subr.mxu0 0.0
    %1361 = vmatpush1.msra.mxu0 %v46
    %1362 = vmatprep.subr.mxu0 0.0
    %1363 = vmatpush1.msra.mxu0 %v153
    %1364 = vmatprep.subr.mxu0 0.0
    %1365 = vmatpush1.msra.mxu0 0.0
    %1366 = vmatprep.subr.mxu0 0.0
    %1367 = vmatpush1.msra.mxu0 0.0
    %1368 = vmatprep.subr.mxu0 0.0
    %1369 = vmatpush1.msra.mxu0 0.0
    %1370 = vmatprep.subr.mxu0 0.0
    %1371 = vmatpush1.msra.mxu0 0.0
    %1372 = vmatprep.subr.mxu0 0.0
    %1373 = vmatpush1.msra.mxu0 0.0
    %1374 = vmatprep.subr.mxu0 0.0
    %1375 = vmatpush1.msra.mxu0 0.0
    %1376 = vmatprep.subr.mxu0 0.0
    %1377 = vmatpush1.msra.mxu0 0.0
    %1378 = vmatprep.subr.mxu0 0.0
    %1379 = vmatpush1.msra.mxu0 0.0
    %1380 = vmatprep.subr.mxu0 0.0
    %1381 = vmatpush1.msra.mxu0 0.0
    %1382 = vmatprep.subr.mxu0 0.0
    %1383 = vmatpush1.msra.mxu0 0.0
    %1384 = vmatprep.subr.mxu0 0.0
    %1385 = vmatpush1.msra.mxu0 0.0
    %1386 = vmatprep.subr.mxu0 0.0
    %1387 = vmatpush1.msra.mxu0 0.0
    %1388 = vmatprep.subr.mxu0 0.0
    %1389 = vmatpush1.msra.mxu0 0.0
    %1390 = vmatprep.subr.mxu0 0.0
    %1391 = vmatpush1.msra.mxu0 0.0
    %1392 = vmatprep.subr.mxu0 0.0
    %1393 = vmatpush1.msra.mxu0 0.0
    %1394 = vmatprep.subr.mxu0 0.0
    %1395 = vmatpush1.msra.mxu0 0.0
    %1396 = vmatprep.subr.mxu0 0.0
    %1397 = vmatpush1.msra.mxu0 0.0
    %1398 = vmatprep.subr.mxu0 0.0
    %1399 = vmatpush1.msra.mxu0 0.0
    %1400 = vmatprep.subr.mxu0 0.0
    %1401 = vmatpush1.msra.mxu0 0.0
    %1402 = vmatprep.subr.mxu0 0.0
    %1403 = vmatpush1.msra.mxu0 0.0
    %1404 = vmatprep.subr.mxu0 0.0
    %1405 = vmatpush1.msra.mxu0 0.0
    %1406 = vmatprep.subr.mxu0 0.0
    %1407 = vmatpush1.msra.mxu0 0.0
    %1408 = vmatprep.subr.mxu0 0.0
    %1409 = vmatpush1.msra.mxu0 0.0
    %1410 = vmatprep.subr.mxu0 0.0
    %1411 = vmatpush1.msra.mxu0 0.0
    %1412 = vmatprep.subr.mxu0 0.0
    %1413 = vmatpush1.msra.mxu0 0.0
    %1414 = vmatprep.subr.mxu0 0.0
    %1415 = vmatpush1.msra.mxu0 0.0
    %1416 = vmatprep.subr.mxu0 0.0
    %1417 = vmatpush1.msra.mxu0 0.0
    %1418 = vmatprep.subr.mxu0 0.0
    %1419 = vmatpush1.msra.mxu0 0.0
    %1420 = vmatprep.subr.mxu0 0.0
    %1421 = vmatpush1.msra.mxu0 0.0
    %1422 = vmatprep.subr.mxu0 0.0
    %1423 = vmatpush1.msra.mxu0 0.0
    %1424 = vmatprep.mubr.f32.mxu0 0.0
    %1425 = vmatmul.mubr.f32.gmra.mrb[0].mxu0 %v1358
    %v1426 = vpop.f32.mrb[0].mxu0
    %v1427 = vadd.f32 0.0, %v1426
    %v1428 = vpop.f32.mrb[0].mxu0
    %1429 = vdwg.mxu0
    %1430 = vmatprep.subr.mxu0 0.0
    %1431 = vmatpush1.xpose.msra.mxu0 %v530
    %1432 = vmatprep.subr.mxu0 0.0
    %1433 = vmatpush1.xpose.msra.mxu0 0.0
    %1434 = vmatprep.subr.mxu0 0.0
    %1435 = vmatpush1.xpose.msra.mxu0 0.0
    %1436 = vmatprep.subr.mxu0 0.0
    %1437 = vmatpush1.xpose.msra.mxu0 0.0
    %1438 = vmatprep.subr.mxu0 0.0
    %1439 = vmatpush1.xpose.msra.mxu0 0.0
    %1440 = vmatprep.subr.mxu0 0.0
    %1441 = vmatpush1.xpose.msra.mxu0 0.0
    %1442 = vmatprep.subr.mxu0 0.0
    %1443 = vmatpush1.xpose.msra.mxu0 0.0
    %1444 = vmatprep.subr.mxu0 0.0
    %1445 = vmatpush1.xpose.msra.mxu0 0.0
    %1446 = vmatprep.subr.mxu0 0.0
    %1447 = vmatpush1.xpose.msra.mxu0 0.0
    %1448 = vmatprep.subr.mxu0 0.0
    %1449 = vmatpush1.xpose.msra.mxu0 0.0
    %1450 = vmatprep.subr.mxu0 0.0
    %1451 = vmatpush1.xpose.msra.mxu0 0.0
    %1452 = vmatprep.subr.mxu0 0.0
    %1453 = vmatpush1.xpose.msra.mxu0 0.0
    %1454 = vmatprep.subr.mxu0 0.0
    %1455 = vmatpush1.xpose.msra.mxu0 0.0
    %1456 = vmatprep.subr.mxu0 0.0
    %1457 = vmatpush1.xpose.msra.mxu0 0.0
    %1458 = vmatprep.subr.mxu0 0.0
    %1459 = vmatpush1.xpose.msra.mxu0 0.0
    %1460 = vmatprep.subr.mxu0 0.0
    %1461 = vmatpush1.xpose.msra.mxu0 0.0
    %1462 = vmatprep.subr.mxu0 0.0
    %1463 = vmatpush1.xpose.msra.mxu0 0.0
    %1464 = vmatprep.subr.mxu0 0.0
    %1465 = vmatpush1.xpose.msra.mxu0 0.0
    %1466 = vmatprep.subr.mxu0 0.0
    %1467 = vmatpush1.xpose.msra.mxu0 0.0
    %1468 = vmatprep.subr.mxu0 0.0
    %1469 = vmatpush1.xpose.msra.mxu0 0.0
    %1470 = vmatprep.subr.mxu0 0.0
    %1471 = vmatpush1.xpose.msra.mxu0 0.0
    %1472 = vmatprep.subr.mxu0 0.0
    %1473 = vmatpush1.xpose.msra.mxu0 0.0
    %1474 = vmatprep.subr.mxu0 0.0
    %1475 = vmatpush1.xpose.msra.mxu0 0.0
    %1476 = vmatprep.subr.mxu0 0.0
    %1477 = vmatpush1.xpose.msra.mxu0 0.0
    %1478 = vmatprep.subr.mxu0 0.0
    %1479 = vmatpush1.xpose.msra.mxu0 0.0
    %1480 = vmatprep.subr.mxu0 0.0
    %1481 = vmatpush1.xpose.msra.mxu0 0.0
    %1482 = vmatprep.subr.mxu0 0.0
    %1483 = vmatpush1.xpose.msra.mxu0 0.0
    %1484 = vmatprep.subr.mxu0 0.0
    %1485 = vmatpush1.xpose.msra.mxu0 0.0
    %1486 = vmatprep.subr.mxu0 0.0
    %1487 = vmatpush1.xpose.msra.mxu0 0.0
    %1488 = vmatprep.subr.mxu0 0.0
    %1489 = vmatpush1.xpose.msra.mxu0 0.0
    %1490 = vmatprep.subr.mxu0 0.0
    %1491 = vmatpush1.xpose.msra.mxu0 0.0
    %1492 = vmatprep.subr.mxu0 0.0
    %1493 = vmatpush1.xpose.msra.mxu0 0.0
    %1494 = vmatprep.mubr.f32.mxu0 0.0
    %1495 = vmatmul.mubr.f32.gmra.mrb[0].mxu0 %v530
    %v1496 = vpop.f32.mrb[0].mxu0
    %v1497 = vadd.f32 0.0, %v1496
    %v1498 = vpop.f32.mrb[0].mxu0
    %1499 = vdwg.mxu0
    %1500 = vmatprep.subr.mxu0 0.0
    %1501 = vmatpush1.xpose.msra.mxu0 %v606
    %1502 = vmatprep.subr.mxu0 0.0
    %1503 = vmatpush1.xpose.msra.mxu0 0.0
    %1504 = vmatprep.subr.mxu0 0.0
    %1505 = vmatpush1.xpose.msra.mxu0 0.0
    %1506 = vmatprep.subr.mxu0 0.0
    %1507 = vmatpush1.xpose.msra.mxu0 0.0
    %1508 = vmatprep.subr.mxu0 0.0
    %1509 = vmatpush1.xpose.msra.mxu0 0.0
    %1510 = vmatprep.subr.mxu0 0.0
    %1511 = vmatpush1.xpose.msra.mxu0 0.0
    %1512 = vmatprep.subr.mxu0 0.0
    %1513 = vmatpush1.xpose.msra.mxu0 0.0
    %1514 = vmatprep.subr.mxu0 0.0
    %1515 = vmatpush1.xpose.msra.mxu0 0.0
    %1516 = vmatprep.subr.mxu0 0.0
    %1517 = vmatpush1.xpose.msra.mxu0 0.0
    %1518 = vmatprep.subr.mxu0 0.0
    %1519 = vmatpush1.xpose.msra.mxu0 0.0
    %1520 = vmatprep.subr.mxu0 0.0
    %1521 = vmatpush1.xpose.msra.mxu0 0.0
    %1522 = vmatprep.subr.mxu0 0.0
    %1523 = vmatpush1.xpose.msra.mxu0 0.0
    %1524 = vmatprep.subr.mxu0 0.0
    %1525 = vmatpush1.xpose.msra.mxu0 0.0
    %1526 = vmatprep.subr.mxu0 0.0
    %1527 = vmatpush1.xpose.msra.mxu0 0.0
    %1528 = vmatprep.subr.mxu0 0.0
    %1529 = vmatpush1.xpose.msra.mxu0 0.0
    %1530 = vmatprep.subr.mxu0 0.0
    %1531 = vmatpush1.xpose.msra.mxu0 0.0
    %1532 = vmatprep.subr.mxu0 0.0
    %1533 = vmatpush1.xpose.msra.mxu0 0.0
    %1534 = vmatprep.subr.mxu0 0.0
    %1535 = vmatpush1.xpose.msra.mxu0 0.0
    %1536 = vmatprep.subr.mxu0 0.0
    %1537 = vmatpush1.xpose.msra.mxu0 0.0
    %1538 = vmatprep.subr.mxu0 0.0
    %1539 = vmatpush1.xpose.msra.mxu0 0.0
    %1540 = vmatprep.subr.mxu0 0.0
    %1541 = vmatpush1.xpose.msra.mxu0 0.0
    %1542 = vmatprep.subr.mxu0 0.0
    %1543 = vmatpush1.xpose.msra.mxu0 0.0
    %1544 = vmatprep.subr.mxu0 0.0
    %1545 = vmatpush1.xpose.msra.mxu0 0.0
    %1546 = vmatprep.subr.mxu0 0.0
    %1547 = vmatpush1.xpose.msra.mxu0 0.0
    %1548 = vmatprep.subr.mxu0 0.0
    %1549 = vmatpush1.xpose.msra.mxu0 0.0
    %1550 = vmatprep.subr.mxu0 0.0
    %1551 = vmatpush1.xpose.msra.mxu0 0.0
    %1552 = vmatprep.subr.mxu0 0.0
    %1553 = vmatpush1.xpose.msra.mxu0 0.0
    %1554 = vmatprep.subr.mxu0 0.0
    %1555 = vmatpush1.xpose.msra.mxu0 0.0
    %1556 = vmatprep.subr.mxu0 0.0
    %1557 = vmatpush1.xpose.msra.mxu0 0.0
    %1558 = vmatprep.subr.mxu0 0.0
    %1559 = vmatpush1.xpose.msra.mxu0 0.0
    %1560 = vmatprep.subr.mxu0 0.0
    %1561 = vmatpush1.xpose.msra.mxu0 0.0
    %1562 = vmatprep.subr.mxu0 0.0
    %1563 = vmatpush1.xpose.msra.mxu0 0.0
    %1564 = vmatprep.mubr.f32.mxu0 0.0
    %1565 = vmatmul.mubr.f32.gmra.mrb[0].mxu0 %v606
    %v1566 = vpop.f32.mrb[0].mxu0
    %v1567 = vadd.f32 0.0, %v1566
    %v1568 = vpop.f32.mrb[0].mxu0
    %1569 = vdwg.mxu0
    %v1570 = vsel %vm252, %v1497, -inf
    %1571 = vmax.xlane.f32.xlu0 %v1570
    %v1572 = vpop.xlane.xlu0 %1571
    %v1573 = vsel %vm252, %v1567, -inf
    %1574 = vmax.xlane.f32.xlu0 %v1573
    %v1575 = vpop.xlane.xlu0 %1574
    %v1576 = vsub.f32 %v1497, %v1572
    %v1577 = vsub.f32 %v1567, %v1575
    %v1578 = vmul.f32 %v1576, 1.442695
    %v1579 = vpow.pop %v1578
    %v1580 = vmul.f32 %v1577, 1.442695
    %v1581 = vpow.pop %v1580
    %v1582 = vsel %vm252, %v1579, 0.0
    %1583 = vadd.xlane.f32.xlu0 %v1582
    %v1584 = vpop.xlane.xlu0 %1583
    %v1585 = vsel %vm252, %v1581, 0.0
    %1586 = vadd.xlane.f32.xlu0 %v1585
    %v1587 = vpop.xlane.xlu0 %1586
    %v1588 = vrcp.pop %v1584
    %v1589 = vmul.f32 %v1579, %v1588
    %v1590 = vrcp.pop %v1587
    %v1591 = vmul.f32 %v1581, %v1590
    %v1593 = vsel %vm252, %v1589, 0
    %1595 = vmatprep.subr.mxu0 0.0
    %1596 = vmatpush1.msra.mxu0 %v323
    %1597 = vmatprep.subr.mxu0 0.0
    %1598 = vmatpush1.msra.mxu0 0.0
    %1599 = vmatprep.subr.mxu0 0.0
    %1600 = vmatpush1.msra.mxu0 0.0
    %1601 = vmatprep.subr.mxu0 0.0
    %1602 = vmatpush1.msra.mxu0 0.0
    %1603 = vmatprep.subr.mxu0 0.0
    %1604 = vmatpush1.msra.mxu0 0.0
    %1605 = vmatprep.subr.mxu0 0.0
    %1606 = vmatpush1.msra.mxu0 0.0
    %1607 = vmatprep.subr.mxu0 0.0
    %1608 = vmatpush1.msra.mxu0 0.0
    %1609 = vmatprep.subr.mxu0 0.0
    %1610 = vmatpush1.msra.mxu0 0.0
    %1611 = vmatprep.subr.mxu0 0.0
    %1612 = vmatpush1.msra.mxu0 0.0
    %1613 = vmatprep.subr.mxu0 0.0
    %1614 = vmatpush1.msra.mxu0 0.0
    %1615 = vmatprep.subr.mxu0 0.0
    %1616 = vmatpush1.msra.mxu0 0.0
    %1617 = vmatprep.subr.mxu0 0.0
    %1618 = vmatpush1.msra.mxu0 0.0
    %1619 = vmatprep.subr.mxu0 0.0
    %1620 = vmatpush1.msra.mxu0 0.0
    %1621 = vmatprep.subr.mxu0 0.0
    %1622 = vmatpush1.msra.mxu0 0.0
    %1623 = vmatprep.subr.mxu0 0.0
    %1624 = vmatpush1.msra.mxu0 0.0
    %1625 = vmatprep.subr.mxu0 0.0
    %1626 = vmatpush1.msra.mxu0 0.0
    %1627 = vmatprep.subr.mxu0 0.0
    %1628 = vmatpush1.msra.mxu0 0.0
    %1629 = vmatprep.subr.mxu0 0.0
    %1630 = vmatpush1.msra.mxu0 0.0
    %1631 = vmatprep.subr.mxu0 0.0
    %1632 = vmatpush1.msra.mxu0 0.0
    %1633 = vmatprep.subr.mxu0 0.0
    %1634 = vmatpush1.msra.mxu0 0.0
    %1635 = vmatprep.subr.mxu0 0.0
    %1636 = vmatpush1.msra.mxu0 0.0
    %1637 = vmatprep.subr.mxu0 0.0
    %1638 = vmatpush1.msra.mxu0 0.0
    %1639 = vmatprep.subr.mxu0 0.0
    %1640 = vmatpush1.msra.mxu0 0.0
    %1641 = vmatprep.subr.mxu0 0.0
    %1642 = vmatpush1.msra.mxu0 0.0
    %1643 = vmatprep.subr.mxu0 0.0
    %1644 = vmatpush1.msra.mxu0 0.0
    %1645 = vmatprep.subr.mxu0 0.0
    %1646 = vmatpush1.msra.mxu0 0.0
    %1647 = vmatprep.subr.mxu0 0.0
    %1648 = vmatpush1.msra.mxu0 0.0
    %1649 = vmatprep.subr.mxu0 0.0
    %1650 = vmatpush1.msra.mxu0 0.0
    %1651 = vmatprep.subr.mxu0 0.0
    %1652 = vmatpush1.msra.mxu0 0.0
    %1653 = vmatprep.subr.mxu0 0.0
    %1654 = vmatpush1.msra.mxu0 0.0
    %1655 = vmatprep.subr.mxu0 0.0
    %1656 = vmatpush1.msra.mxu0 0.0
    %1657 = vmatprep.subr.mxu0 0.0
    %1658 = vmatpush1.msra.mxu0 0.0
    %1659 = vmatprep.mubr.f32.mxu0 0.0
    %1660 = vmatmul.mubr.f32.gmra.mrb[0].mxu0 %v1593
    %v1661 = vpop.f32.mrb[0].mxu0
    %v1662 = vadd.f32 0.0, %v1661
    %v1663 = vpop.f32.mrb[0].mxu0
    %1664 = vdwg.mxu0
    %v1666 = vsel %vm252, %v1591, 0
    %1668 = vmatprep.subr.mxu0 0.0
    %1669 = vmatpush1.msra.mxu0 %v396
    %1670 = vmatprep.subr.mxu0 0.0
    %1671 = vmatpush1.msra.mxu0 0.0
    %1672 = vmatprep.subr.mxu0 0.0
    %1673 = vmatpush1.msra.mxu0 0.0
    %1674 = vmatprep.subr.mxu0 0.0
    %1675 = vmatpush1.msra.mxu0 0.0
    %1676 = vmatprep.subr.mxu0 0.0
    %1677 = vmatpush1.msra.mxu0 0.0
    %1678 = vmatprep.subr.mxu0 0.0
    %1679 = vmatpush1.msra.mxu0 0.0
    %1680 = vmatprep.subr.mxu0 0.0
    %1681 = vmatpush1.msra.mxu0 0.0
    %1682 = vmatprep.subr.mxu0 0.0
    %1683 = vmatpush1.msra.mxu0 0.0
    %1684 = vmatprep.subr.mxu0 0.0
    %1685 = vmatpush1.msra.mxu0 0.0
    %1686 = vmatprep.subr.mxu0 0.0
    %1687 = vmatpush1.msra.mxu0 0.0
    %1688 = vmatprep.subr.mxu0 0.0
    %1689 = vmatpush1.msra.mxu0 0.0
    %1690 = vmatprep.subr.mxu0 0.0
    %1691 = vmatpush1.msra.mxu0 0.0
    %1692 = vmatprep.subr.mxu0 0.0
    %1693 = vmatpush1.msra.mxu0 0.0
    %1694 = vmatprep.subr.mxu0 0.0
    %1695 = vmatpush1.msra.mxu0 0.0
    %1696 = vmatprep.subr.mxu0 0.0
    %1697 = vmatpush1.msra.mxu0 0.0
    %1698 = vmatprep.subr.mxu0 0.0
    %1699 = vmatpush1.msra.mxu0 0.0
    %1700 = vmatprep.subr.mxu0 0.0
    %1701 = vmatpush1.msra.mxu0 0.0
    %1702 = vmatprep.subr.mxu0 0.0
    %1703 = vmatpush1.msra.mxu0 0.0
    %1704 = vmatprep.subr.mxu0 0.0
    %1705 = vmatpush1.msra.mxu0 0.0
    %1706 = vmatprep.subr.mxu0 0.0
    %1707 = vmatpush1.msra.mxu0 0.0
    %1708 = vmatprep.subr.mxu0 0.0
    %1709 = vmatpush1.msra.mxu0 0.0
    %1710 = vmatprep.subr.mxu0 0.0
    %1711 = vmatpush1.msra.mxu0 0.0
    %1712 = vmatprep.subr.mxu0 0.0
    %1713 = vmatpush1.msra.mxu0 0.0
    %1714 = vmatprep.subr.mxu0 0.0
    %1715 = vmatpush1.msra.mxu0 0.0
    %1716 = vmatprep.subr.mxu0 0.0
    %1717 = vmatpush1.msra.mxu0 0.0
    %1718 = vmatprep.subr.mxu0 0.0
    %1719 = vmatpush1.msra.mxu0 0.0
    %1720 = vmatprep.subr.mxu0 0.0
    %1721 = vmatpush1.msra.mxu0 0.0
    %1722 = vmatprep.subr.mxu0 0.0
    %1723 = vmatpush1.msra.mxu0 0.0
    %1724 = vmatprep.subr.mxu0 0.0
    %1725 = vmatpush1.msra.mxu0 0.0
    %1726 = vmatprep.subr.mxu0 0.0
    %1727 = vmatpush1.msra.mxu0 0.0
    %1728 = vmatprep.subr.mxu0 0.0
    %1729 = vmatpush1.msra.mxu0 0.0
    %1730 = vmatprep.subr.mxu0 0.0
    %1731 = vmatpush1.msra.mxu0 0.0
    %1732 = vmatprep.mubr.f32.mxu0 0.0
    %1733 = vmatmul.mubr.f32.gmra.mrb[0].mxu0 %v1666
    %v1734 = vpop.f32.mrb[0].mxu0
    %v1735 = vadd.f32 0.0, %v1734
    %v1736 = vpop.f32.mrb[0].mxu0
    %1737 = vdwg.mxu0
    %1740 = vrot.lane.b32.xlu0 %v916, 32
    %v1741 = vpop.permute.xlu0 %1740
    %1742 = vrot.lane.b32.xlu0 %v989, 32
    %v1743 = vpop.permute.xlu0 %1742
    %1748 = vrot.lane.b32.xlu0 %v1354, 64
    %v1749 = vpop.permute.xlu0 %1748
    %1750 = vrot.lane.b32.xlu0 %v1427, 64
    %v1751 = vpop.permute.xlu0 %1750
    %v1754 = vsel %vm417, %v138, %v1741
    %v1755 = vsel %vm417, %v222, %v1743
    %v1756 = vsel %vm420, %v1754, %v1749
    %v1757 = vsel %vm420, %v1755, %v1751
    %1760 = vrot.lane.b32.xlu0 %v1062, 32
    %v1761 = vpop.permute.xlu0 %1760
    %1762 = vrot.lane.b32.xlu0 %v1135, 32
    %v1763 = vpop.permute.xlu0 %1762
    %1768 = vrot.lane.b32.xlu0 %v1662, 64
    %v1769 = vpop.permute.xlu0 %1768
    %1770 = vrot.lane.b32.xlu0 %v1735, 64
    %v1771 = vpop.permute.xlu0 %1770
    %v1774 = vsel %vm417, %v323, %v1761
    %v1775 = vsel %vm417, %v396, %v1763
    %v1776 = vsel %vm420, %v1774, %v1769
    %v1777 = vsel %vm420, %v1775, %v1771
    %v1778 = vld [vmem:[%s7] sm:$0xff]
    %v1779 = vld [vmem:[%s7 + $0x8] sm:$0xff]
    %v1780 = vld [vmem:[%s7 + $0x10] sm:$0xff]
    %v1781 = vld [vmem:[%s7 + $0x18] sm:$0xff]
    %v1782 = vld [vmem:[%s7 + $0x20] sm:$0xff]
    %v1783 = vld [vmem:[%s7 + $0x28] sm:$0xff]
    %v1784 = vld [vmem:[%s7 + $0x30] sm:$0xff]
    %v1785 = vld [vmem:[%s7 + $0x38] sm:$0xff]
    %v1786 = vld [vmem:[%s7 + $0x40] sm:$0xff]
    %v1787 = vld [vmem:[%s7 + $0x48] sm:$0xff]
    %v1788 = vld [vmem:[%s7 + $0x50] sm:$0xff]
    %v1789 = vld [vmem:[%s7 + $0x58] sm:$0xff]
    %v1791 = vsel %vm442, %v1756, 0
    %v1794 = vsel %vm442, %v1757, 0
    %1796 = vmatprep.subr.mxu0 0.0
    %1797 = vmatpush1.msra.mxu0 %v1778
    %1798 = vmatprep.subr.mxu0 0.0
    %1799 = vmatpush1.msra.mxu0 %v1779
    %1800 = vmatprep.subr.mxu0 0.0
    %1801 = vmatpush1.msra.mxu0 %v1780
    %1802 = vmatprep.subr.mxu0 0.0
    %1803 = vmatpush1.msra.mxu0 %v1781
    %1804 = vmatprep.subr.mxu0 0.0
    %1805 = vmatpush1.msra.mxu0 %v1782
    %1806 = vmatprep.subr.mxu0 0.0
    %1807 = vmatpush1.msra.mxu0 %v1783
    %1808 = vmatprep.subr.mxu0 0.0
    %1809 = vmatpush1.msra.mxu0 %v1784
    %1810 = vmatprep.subr.mxu0 0.0
    %1811 = vmatpush1.msra.mxu0 %v1785
    %1812 = vmatprep.subr.mxu0 0.0
    %1813 = vmatpush1.msra.mxu0 %v1786
    %1814 = vmatprep.subr.mxu0 0.0
    %1815 = vmatpush1.msra.mxu0 %v1787
    %1816 = vmatprep.subr.mxu0 0.0
    %1817 = vmatpush1.msra.mxu0 %v1788
    %1818 = vmatprep.subr.mxu0 0.0
    %1819 = vmatpush1.msra.mxu0 %v1789
    %1820 = vmatprep.subr.mxu0 0.0
    %1821 = vmatpush1.msra.mxu0 0.0
    %1822 = vmatprep.subr.mxu0 0.0
    %1823 = vmatpush1.msra.mxu0 0.0
    %1824 = vmatprep.subr.mxu0 0.0
    %1825 = vmatpush1.msra.mxu0 0.0
    %1826 = vmatprep.subr.mxu0 0.0
    %1827 = vmatpush1.msra.mxu0 0.0
    %1828 = vmatprep.subr.mxu0 0.0
    %1829 = vmatpush1.msra.mxu0 0.0
    %1830 = vmatprep.subr.mxu0 0.0
    %1831 = vmatpush1.msra.mxu0 0.0
    %1832 = vmatprep.subr.mxu0 0.0
    %1833 = vmatpush1.msra.mxu0 0.0
    %1834 = vmatprep.subr.mxu0 0.0
    %1835 = vmatpush1.msra.mxu0 0.0
    %1836 = vmatprep.subr.mxu0 0.0
    %1837 = vmatpush1.msra.mxu0 0.0
    %1838 = vmatprep.subr.mxu0 0.0
    %1839 = vmatpush1.msra.mxu0 0.0
    %1840 = vmatprep.subr.mxu0 0.0
    %1841 = vmatpush1.msra.mxu0 0.0
    %1842 = vmatprep.subr.mxu0 0.0
    %1843 = vmatpush1.msra.mxu0 0.0
    %1844 = vmatprep.subr.mxu0 0.0
    %1845 = vmatpush1.msra.mxu0 0.0
    %1846 = vmatprep.subr.mxu0 0.0
    %1847 = vmatpush1.msra.mxu0 0.0
    %1848 = vmatprep.subr.mxu0 0.0
    %1849 = vmatpush1.msra.mxu0 0.0
    %1850 = vmatprep.subr.mxu0 0.0
    %1851 = vmatpush1.msra.mxu0 0.0
    %1852 = vmatprep.subr.mxu0 0.0
    %1853 = vmatpush1.msra.mxu0 0.0
    %1854 = vmatprep.subr.mxu0 0.0
    %1855 = vmatpush1.msra.mxu0 0.0
    %1856 = vmatprep.subr.mxu0 0.0
    %1857 = vmatpush1.msra.mxu0 0.0
    %1858 = vmatprep.subr.mxu0 0.0
    %1859 = vmatpush1.msra.mxu0 0.0
    %1860 = vmatprep.mubr.f32.mxu0 0.0
    %1861 = vmatmul.mubr.f32.gmra.mrb[0].mxu0 %v1791
    %v1862 = vpop.f32.mrb[0].mxu0
    %v1863 = vadd.f32 0.0, %v1862
    %v1864 = vpop.f32.mrb[0].mxu0
    %1865 = vmatprep.mubr.f32.mxu0 0.0
    %1866 = vmatmul.mubr.f32.gmra.mrb[0].mxu0 %v1794
    %v1867 = vpop.f32.mrb[0].mxu0
    %v1868 = vadd.f32 0.0, %v1867
    %v1869 = vpop.f32.mrb[0].mxu0
    %1870 = vdwg.mxu0
    %v1871 = vld [vmem:[%s8] sm:$0xff]
    %v1872 = vld [vmem:[%s8 + $0x8] sm:$0xff]
    %v1873 = vld [vmem:[%s8 + $0x10] sm:$0xff]
    %v1874 = vld [vmem:[%s8 + $0x18] sm:$0xff]
    %v1875 = vld [vmem:[%s8 + $0x20] sm:$0xff]
    %v1876 = vld [vmem:[%s8 + $0x28] sm:$0xff]
    %v1877 = vld [vmem:[%s8 + $0x30] sm:$0xff]
    %v1878 = vld [vmem:[%s8 + $0x38] sm:$0xff]
    %v1879 = vld [vmem:[%s8 + $0x40] sm:$0xff]
    %v1880 = vld [vmem:[%s8 + $0x48] sm:$0xff]
    %v1881 = vld [vmem:[%s8 + $0x50] sm:$0xff]
    %v1882 = vld [vmem:[%s8 + $0x58] sm:$0xff]
    %v1884 = vsel %vm442, %v1776, 0
    %v1887 = vsel %vm442, %v1777, 0
    %1889 = vmatprep.subr.mxu0 0.0
    %1890 = vmatpush1.msra.mxu0 %v1871
    %1891 = vmatprep.subr.mxu0 0.0
    %1892 = vmatpush1.msra.mxu0 %v1872
    %1893 = vmatprep.subr.mxu0 0.0
    %1894 = vmatpush1.msra.mxu0 %v1873
    %1895 = vmatprep.subr.mxu0 0.0
    %1896 = vmatpush1.msra.mxu0 %v1874
    %1897 = vmatprep.subr.mxu0 0.0
    %1898 = vmatpush1.msra.mxu0 %v1875
    %1899 = vmatprep.subr.mxu0 0.0
    %1900 = vmatpush1.msra.mxu0 %v1876
    %1901 = vmatprep.subr.mxu0 0.0
    %1902 = vmatpush1.msra.mxu0 %v1877
    %1903 = vmatprep.subr.mxu0 0.0
    %1904 = vmatpush1.msra.mxu0 %v1878
    %1905 = vmatprep.subr.mxu0 0.0
    %1906 = vmatpush1.msra.mxu0 %v1879
    %1907 = vmatprep.subr.mxu0 0.0
    %1908 = vmatpush1.msra.mxu0 %v1880
    %1909 = vmatprep.subr.mxu0 0.0
    %1910 = vmatpush1.msra.mxu0 %v1881
    %1911 = vmatprep.subr.mxu0 0.0
    %1912 = vmatpush1.msra.mxu0 %v1882
    %1913 = vmatprep.subr.mxu0 0.0
    %1914 = vmatpush1.msra.mxu0 0.0
    %1915 = vmatprep.subr.mxu0 0.0
    %1916 = vmatpush1.msra.mxu0 0.0
    %1917 = vmatprep.subr.mxu0 0.0
    %1918 = vmatpush1.msra.mxu0 0.0
    %1919 = vmatprep.subr.mxu0 0.0
    %1920 = vmatpush1.msra.mxu0 0.0
    %1921 = vmatprep.subr.mxu0 0.0
    %1922 = vmatpush1.msra.mxu0 0.0
    %1923 = vmatprep.subr.mxu0 0.0
    %1924 = vmatpush1.msra.mxu0 0.0
    %1925 = vmatprep.subr.mxu0 0.0
    %1926 = vmatpush1.msra.mxu0 0.0
    %1927 = vmatprep.subr.mxu0 0.0
    %1928 = vmatpush1.msra.mxu0 0.0
    %1929 = vmatprep.subr.mxu0 0.0
    %1930 = vmatpush1.msra.mxu0 0.0
    %1931 = vmatprep.subr.mxu0 0.0
    %1932 = vmatpush1.msra.mxu0 0.0
    %1933 = vmatprep.subr.mxu0 0.0
    %1934 = vmatpush1.msra.mxu0 0.0
    %1935 = vmatprep.subr.mxu0 0.0
    %1936 = vmatpush1.msra.mxu0 0.0
    %1937 = vmatprep.subr.mxu0 0.0
    %1938 = vmatpush1.msra.mxu0 0.0
    %1939 = vmatprep.subr.mxu0 0.0
    %1940 = vmatpush1.msra.mxu0 0.0
    %1941 = vmatprep.subr.mxu0 0.0
    %1942 = vmatpush1.msra.mxu0 0.0
    %1943 = vmatprep.subr.mxu0 0.0
    %1944 = vmatpush1.msra.mxu0 0.0
    %1945 = vmatprep.subr.mxu0 0.0
    %1946 = vmatpush1.msra.mxu0 0.0
    %1947 = vmatprep.subr.mxu0 0.0
    %1948 = vmatpush1.msra.mxu0 0.0
    %1949 = vmatprep.subr.mxu0 0.0
    %1950 = vmatpush1.msra.mxu0 0.0
    %1951 = vmatprep.subr.mxu0 0.0
    %1952 = vmatpush1.msra.mxu0 0.0
    %1953 = vmatprep.mubr.f32.mxu0 0.0
    %1954 = vmatmul.mubr.f32.gmra.mrb[0].mxu0 %v1884
    %v1955 = vpop.f32.mrb[0].mxu0
    %v1956 = vadd.f32 0.0, %v1955
    %v1957 = vpop.f32.mrb[0].mxu0
    %1958 = vmatprep.mubr.f32.mxu0 0.0
    %1959 = vmatmul.mubr.f32.gmra.mrb[0].mxu0 %v1887
    %v1960 = vpop.f32.mrb[0].mxu0
    %v1961 = vadd.f32 0.0, %v1960
    %v1962 = vpop.f32.mrb[0].mxu0
    %1963 = vdwg.mxu0
    %v1964 = vlaneseq
    %v1965 = vshrl.u32 %v1964, 7
    %v1966 = vadd.s32 %v1965, 8
    %v1967 = vadd.s32 %v1965, 16
    %v1968 = vadd.s32 %v1965, 24
    %v1969 = vadd.s32 %v1965, 32
    %v1970 = vadd.s32 %v1965, 40
    %v1971 = vadd.s32 %v1965, 48
    %v1972 = vadd.s32 %v1965, 56
    %v1973 = vadd.s32 %v1965, 64
    %v1974 = vadd.s32 %v1965, 72
    %v1975 = vadd.s32 %v1965, 80
    %v1976 = vadd.s32 %v1965, 88
    %v1977 = vadd.s32 %v1965, 96
    %v1978 = vadd.s32 %v1965, 104
    %v1979 = vadd.s32 %v1965, 112
    %v1980 = vadd.s32 %v1965, 120
    %v1981 = vlaneseq
    %v1982 = vand.u32 %v1981, 127
    %v1983 = vmul.u32 %v1982, 8
    %vm1984 = vcmp.ge.s32.totalorder %v1965, %v1983
    %vm1985 = vcmp.ge.s32.totalorder %v1966, %v1983
    %vm1986 = vcmp.ge.s32.totalorder %v1967, %v1983
    %vm1987 = vcmp.ge.s32.totalorder %v1968, %v1983
    %vm1988 = vcmp.ge.s32.totalorder %v1969, %v1983
    %vm1989 = vcmp.ge.s32.totalorder %v1970, %v1983
    %vm1990 = vcmp.ge.s32.totalorder %v1971, %v1983
    %vm1991 = vcmp.ge.s32.totalorder %v1972, %v1983
    %vm1992 = vcmp.ge.s32.totalorder %v1973, %v1983
    %vm1993 = vcmp.ge.s32.totalorder %v1974, %v1983
    %vm1994 = vcmp.ge.s32.totalorder %v1975, %v1983
    %vm1995 = vcmp.ge.s32.totalorder %v1976, %v1983
    %vm1996 = vcmp.ge.s32.totalorder %v1977, %v1983
    %vm1997 = vcmp.ge.s32.totalorder %v1978, %v1983
    %vm1998 = vcmp.ge.s32.totalorder %v1979, %v1983
    %vm1999 = vcmp.ge.s32.totalorder %v1980, %v1983
    %v2000 = vadd.s32 %v1982, 1
    %v2001 = vmul.u32 %v2000, 8
    %vm2002 = vcmp.lt.s32.totalorder %v1965, %v2001
    %vm2003 = vcmp.lt.s32.totalorder %v1966, %v2001
    %vm2004 = vcmp.lt.s32.totalorder %v1967, %v2001
    %vm2005 = vcmp.lt.s32.totalorder %v1968, %v2001
    %vm2006 = vcmp.lt.s32.totalorder %v1969, %v2001
    %vm2007 = vcmp.lt.s32.totalorder %v1970, %v2001
    %vm2008 = vcmp.lt.s32.totalorder %v1971, %v2001
    %vm2009 = vcmp.lt.s32.totalorder %v1972, %v2001
    %vm2010 = vcmp.lt.s32.totalorder %v1973, %v2001
    %vm2011 = vcmp.lt.s32.totalorder %v1974, %v2001
    %vm2012 = vcmp.lt.s32.totalorder %v1975, %v2001
    %vm2013 = vcmp.lt.s32.totalorder %v1976, %v2001
    %vm2014 = vcmp.lt.s32.totalorder %v1977, %v2001
    %vm2015 = vcmp.lt.s32.totalorder %v1978, %v2001
    %vm2016 = vcmp.lt.s32.totalorder %v1979, %v2001
    %vm2017 = vcmp.lt.s32.totalorder %v1980, %v2001
    %vm2018 = vmand %vm1984, %vm2002
    %vm2019 = vmand %vm1985, %vm2003
    %vm2020 = vmand %vm1986, %vm2004
    %vm2021 = vmand %vm1987, %vm2005
    %vm2022 = vmand %vm1988, %vm2006
    %vm2023 = vmand %vm1989, %vm2007
    %vm2024 = vmand %vm1990, %vm2008
    %vm2025 = vmand %vm1991, %vm2009
    %vm2026 = vmand %vm1992, %vm2010
    %vm2027 = vmand %vm1993, %vm2011
    %vm2028 = vmand %vm1994, %vm2012
    %vm2029 = vmand %vm1995, %vm2013
    %vm2030 = vmand %vm1996, %vm2014
    %vm2031 = vmand %vm1997, %vm2015
    %vm2032 = vmand %vm1998, %vm2016
    %vm2033 = vmand %vm1999, %vm2017
    %v2034 = vsel %vm2018, 1, 0
    %v2035 = vsel %vm2019, 1, 0
    %v2036 = vsel %vm2020, 1, 0
    %v2037 = vsel %vm2021, 1, 0
    %v2038 = vsel %vm2022, 1, 0
    %v2039 = vsel %vm2023, 1, 0
    %v2040 = vsel %vm2024, 1, 0
    %v2041 = vsel %vm2025, 1, 0
    %v2042 = vsel %vm2026, 1, 0
    %v2043 = vsel %vm2027, 1, 0
    %v2044 = vsel %vm2028, 1, 0
    %v2045 = vsel %vm2029, 1, 0
    %v2046 = vsel %vm2030, 1, 0
    %v2047 = vsel %vm2031, 1, 0
    %v2048 = vsel %vm2032, 1, 0
    %v2049 = vsel %vm2033, 1, 0
    %v2050 = vcvt.s32.f32 %v2034
    %v2051 = vcvt.s32.f32 %v2035
    %v2052 = vcvt.s32.f32 %v2036
    %v2053 = vcvt.s32.f32 %v2037
    %v2054 = vcvt.s32.f32 %v2038
    %v2055 = vcvt.s32.f32 %v2039
    %v2056 = vcvt.s32.f32 %v2040
    %v2057 = vcvt.s32.f32 %v2041
    %v2058 = vcvt.s32.f32 %v2042
    %v2059 = vcvt.s32.f32 %v2043
    %v2060 = vcvt.s32.f32 %v2044
    %v2061 = vcvt.s32.f32 %v2045
    %v2062 = vcvt.s32.f32 %v2046
    %v2063 = vcvt.s32.f32 %v2047
    %v2064 = vcvt.s32.f32 %v2048
    %v2065 = vcvt.s32.f32 %v2049
    %vm2066 = vcmask 130048
    %v2068 = vsel %vm2066, %v2050, 0
    %v2071 = vsel %vm2066, %v2051, 0
    %v2074 = vsel %vm2066, %v2052, 0
    %v2077 = vsel %vm2066, %v2053, 0
    %v2080 = vsel %vm2066, %v2054, 0
    %v2083 = vsel %vm2066, %v2055, 0
    %v2086 = vsel %vm2066, %v2056, 0
    %v2089 = vsel %vm2066, %v2057, 0
    %v2092 = vsel %vm2066, %v2058, 0
    %v2095 = vsel %vm2066, %v2059, 0
    %v2098 = vsel %vm2066, %v2060, 0
    %v2101 = vsel %vm2066, %v2061, 0
    %v2104 = vsel %vm2066, %v2062, 0
    %v2107 = vsel %vm2066, %v2063, 0
    %v2110 = vsel %vm2066, %v2064, 0
    %v2113 = vsel %vm2066, %v2065, 0
    %2115 = vmatprep.subr.mxu0 0.0
    %2116 = vmatpush1.msra.mxu0 %v1863
    %2117 = vmatprep.subr.mxu0 0.0
    %2118 = vmatpush1.msra.mxu0 %v1868
    %2119 = vmatprep.subr.mxu0 0.0
    %2120 = vmatpush1.msra.mxu0 0.0
    %2121 = vmatprep.subr.mxu0 0.0
    %2122 = vmatpush1.msra.mxu0 0.0
    %2123 = vmatprep.subr.mxu0 0.0
    %2124 = vmatpush1.msra.mxu0 0.0
    %2125 = vmatprep.subr.mxu0 0.0
    %2126 = vmatpush1.msra.mxu0 0.0
    %2127 = vmatprep.subr.mxu0 0.0
    %2128 = vmatpush1.msra.mxu0 0.0
    %2129 = vmatprep.subr.mxu0 0.0
    %2130 = vmatpush1.msra.mxu0 0.0
    %2131 = vmatprep.subr.mxu0 0.0
    %2132 = vmatpush1.msra.mxu0 0.0
    %2133 = vmatprep.subr.mxu0 0.0
    %2134 = vmatpush1.msra.mxu0 0.0
    %2135 = vmatprep.subr.mxu0 0.0
    %2136 = vmatpush1.msra.mxu0 0.0
    %2137 = vmatprep.subr.mxu0 0.0
    %2138 = vmatpush1.msra.mxu0 0.0
    %2139 = vmatprep.subr.mxu0 0.0
    %2140 = vmatpush1.msra.mxu0 0.0
    %2141 = vmatprep.subr.mxu0 0.0
    %2142 = vmatpush1.msra.mxu0 0.0
    %2143 = vmatprep.subr.mxu0 0.0
    %2144 = vmatpush1.msra.mxu0 0.0
    %2145 = vmatprep.subr.mxu0 0.0
    %2146 = vmatpush1.msra.mxu0 0.0
    %2147 = vmatprep.subr.mxu0 0.0
    %2148 = vmatpush1.msra.mxu0 0.0
    %2149 = vmatprep.subr.mxu0 0.0
    %2150 = vmatpush1.msra.mxu0 0.0
    %2151 = vmatprep.subr.mxu0 0.0
    %2152 = vmatpush1.msra.mxu0 0.0
    %2153 = vmatprep.subr.mxu0 0.0
    %2154 = vmatpush1.msra.mxu0 0.0
    %2155 = vmatprep.subr.mxu0 0.0
    %2156 = vmatpush1.msra.mxu0 0.0
    %2157 = vmatprep.subr.mxu0 0.0
    %2158 = vmatpush1.msra.mxu0 0.0
    %2159 = vmatprep.subr.mxu0 0.0
    %2160 = vmatpush1.msra.mxu0 0.0
    %2161 = vmatprep.subr.mxu0 0.0
    %2162 = vmatpush1.msra.mxu0 0.0
    %2163 = vmatprep.subr.mxu0 0.0
    %2164 = vmatpush1.msra.mxu0 0.0
    %2165 = vmatprep.subr.mxu0 0.0
    %2166 = vmatpush1.msra.mxu0 0.0
    %2167 = vmatprep.subr.mxu0 0.0
    %2168 = vmatpush1.msra.mxu0 0.0
    %2169 = vmatprep.subr.mxu0 0.0
    %2170 = vmatpush1.msra.mxu0 0.0
    %2171 = vmatprep.subr.mxu0 0.0
    %2172 = vmatpush1.msra.mxu0 0.0
    %2173 = vmatprep.subr.mxu0 0.0
    %2174 = vmatpush1.msra.mxu0 0.0
    %2175 = vmatprep.subr.mxu0 0.0
    %2176 = vmatpush1.msra.mxu0 0.0
    %2177 = vmatprep.subr.mxu0 0.0
    %2178 = vmatpush1.msra.mxu0 0.0
    %2179 = vmatprep.mubr.f32.mxu0 0.0
    %2180 = vmatmul.mubr.f32.gmra.mrb[0].mxu0 %v2068
    %v2181 = vpop.f32.mrb[0].mxu0
    %v2182 = vadd.f32 %v1956, %v2181
    %v2183 = vpop.f32.mrb[0].mxu0
    %2184 = vmatprep.mubr.f32.mxu0 0.0
    %2185 = vmatmul.mubr.f32.gmra.mrb[0].mxu0 %v2071
    %v2186 = vpop.f32.mrb[0].mxu0
    %v2187 = vadd.f32 %v1956, %v2186
    %v2188 = vpop.f32.mrb[0].mxu0
    %2189 = vmatprep.mubr.f32.mxu0 0.0
    %2190 = vmatmul.mubr.f32.gmra.mrb[0].mxu0 %v2074
    %v2191 = vpop.f32.mrb[0].mxu0
    %v2192 = vadd.f32 %v1956, %v2191
    %v2193 = vpop.f32.mrb[0].mxu0
    %2194 = vmatprep.mubr.f32.mxu0 0.0
    %2195 = vmatmul.mubr.f32.gmra.mrb[0].mxu0 %v2077
    %v2196 = vpop.f32.mrb[0].mxu0
    %v2197 = vadd.f32 %v1956, %v2196
    %v2198 = vpop.f32.mrb[0].mxu0
    %2199 = vmatprep.mubr.f32.mxu0 0.0
    %2200 = vmatmul.mubr.f32.gmra.mrb[0].mxu0 %v2080
    %v2201 = vpop.f32.mrb[0].mxu0
    %v2202 = vadd.f32 %v1956, %v2201
    %v2203 = vpop.f32.mrb[0].mxu0
    %2204 = vmatprep.mubr.f32.mxu0 0.0
    %2205 = vmatmul.mubr.f32.gmra.mrb[0].mxu0 %v2083
    %v2206 = vpop.f32.mrb[0].mxu0
    %v2207 = vadd.f32 %v1956, %v2206
    %v2208 = vpop.f32.mrb[0].mxu0
    %2209 = vmatprep.mubr.f32.mxu0 0.0
    %2210 = vmatmul.mubr.f32.gmra.mrb[0].mxu0 %v2086
    %v2211 = vpop.f32.mrb[0].mxu0
    %v2212 = vadd.f32 %v1956, %v2211
    %v2213 = vpop.f32.mrb[0].mxu0
    %2214 = vmatprep.mubr.f32.mxu0 0.0
    %2215 = vmatmul.mubr.f32.gmra.mrb[0].mxu0 %v2089
    %v2216 = vpop.f32.mrb[0].mxu0
    %v2217 = vadd.f32 %v1956, %v2216
    %v2218 = vpop.f32.mrb[0].mxu0
    %2219 = vmatprep.mubr.f32.mxu0 0.0
    %2220 = vmatmul.mubr.f32.gmra.mrb[0].mxu0 %v2092
    %v2221 = vpop.f32.mrb[0].mxu0
    %v2222 = vadd.f32 %v1961, %v2221
    %v2223 = vpop.f32.mrb[0].mxu0
    %2224 = vmatprep.mubr.f32.mxu0 0.0
    %2225 = vmatmul.mubr.f32.gmra.mrb[0].mxu0 %v2095
    %v2226 = vpop.f32.mrb[0].mxu0
    %v2227 = vadd.f32 %v1961, %v2226
    %v2228 = vpop.f32.mrb[0].mxu0
    %2229 = vmatprep.mubr.f32.mxu0 0.0
    %2230 = vmatmul.mubr.f32.gmra.mrb[0].mxu0 %v2098
    %v2231 = vpop.f32.mrb[0].mxu0
    %v2232 = vadd.f32 %v1961, %v2231
    %v2233 = vpop.f32.mrb[0].mxu0
    %2234 = vmatprep.mubr.f32.mxu0 0.0
    %2235 = vmatmul.mubr.f32.gmra.mrb[0].mxu0 %v2101
    %v2236 = vpop.f32.mrb[0].mxu0
    %v2237 = vadd.f32 %v1961, %v2236
    %v2238 = vpop.f32.mrb[0].mxu0
    %2239 = vmatprep.mubr.f32.mxu0 0.0
    %2240 = vmatmul.mubr.f32.gmra.mrb[0].mxu0 %v2104
    %v2241 = vpop.f32.mrb[0].mxu0
    %v2242 = vadd.f32 %v1961, %v2241
    %v2243 = vpop.f32.mrb[0].mxu0
    %2244 = vmatprep.mubr.f32.mxu0 0.0
    %2245 = vmatmul.mubr.f32.gmra.mrb[0].mxu0 %v2107
    %v2246 = vpop.f32.mrb[0].mxu0
    %v2247 = vadd.f32 %v1961, %v2246
    %v2248 = vpop.f32.mrb[0].mxu0
    %2249 = vmatprep.mubr.f32.mxu0 0.0
    %2250 = vmatmul.mubr.f32.gmra.mrb[0].mxu0 %v2110
    %v2251 = vpop.f32.mrb[0].mxu0
    %v2252 = vadd.f32 %v1961, %v2251
    %v2253 = vpop.f32.mrb[0].mxu0
    %2254 = vmatprep.mubr.f32.mxu0 0.0
    %2255 = vmatmul.mubr.f32.gmra.mrb[0].mxu0 %v2113
    %v2256 = vpop.f32.mrb[0].mxu0
    %v2257 = vadd.f32 %v1961, %v2256
    %v2258 = vpop.f32.mrb[0].mxu0
    %2259 = vdwg.mxu0
    %v2260 = vld [vmem:[%s9] sm:$0x1]
    %v2262 = vlaneseq
    %v2263 = vshrl.u32 %v2262, 7
    %v2264 = vsub.s32 0, %v2263
    %v2265 = vrot.slane %v2260, %v2264
    %v2267 = vadd.f32 %v2182, %v2265
    %v2268 = vadd.f32 %v2187, %v2265
    %v2269 = vadd.f32 %v2192, %v2265
    %v2270 = vadd.f32 %v2197, %v2265
    %v2271 = vadd.f32 %v2202, %v2265
    %v2272 = vadd.f32 %v2207, %v2265
    %v2273 = vadd.f32 %v2212, %v2265
    %v2274 = vadd.f32 %v2217, %v2265
    %v2275 = vadd.f32 %v2222, %v2265
    %v2276 = vadd.f32 %v2227, %v2265
    %v2277 = vadd.f32 %v2232, %v2265
    %v2278 = vadd.f32 %v2237, %v2265
    %v2279 = vadd.f32 %v2242, %v2265
    %v2280 = vadd.f32 %v2247, %v2265
    %v2281 = vadd.f32 %v2252, %v2265
    %v2282 = vadd.f32 %v2257, %v2265
    %v2283 = vmul.f32 %v2267, 0.5
    %v2284 = vmul.f32 %v2268, 0.5
    %v2285 = vmul.f32 %v2269, 0.5
    %v2286 = vmul.f32 %v2270, 0.5
    %v2287 = vmul.f32 %v2271, 0.5
    %v2288 = vmul.f32 %v2272, 0.5
    %v2289 = vmul.f32 %v2273, 0.5
    %v2290 = vmul.f32 %v2274, 0.5
    %v2291 = vmul.f32 %v2275, 0.5
    %v2292 = vmul.f32 %v2276, 0.5
    %v2293 = vmul.f32 %v2277, 0.5
    %v2294 = vmul.f32 %v2278, 0.5
    %v2295 = vmul.f32 %v2279, 0.5
    %v2296 = vmul.f32 %v2280, 0.5
    %v2297 = vmul.f32 %v2281, 0.5
    %v2298 = vmul.f32 %v2282, 0.5
    %v2299 = vmul.f32 %v2267, 0.70710677
    %v2300 = vmul.f32 %v2268, 0.70710677
    %v2301 = vmul.f32 %v2269, 0.70710677
    %v2302 = vmul.f32 %v2270, 0.70710677
    %v2303 = vmul.f32 %v2271, 0.70710677
    %v2304 = vmul.f32 %v2272, 0.70710677
    %v2305 = vmul.f32 %v2273, 0.70710677
    %v2306 = vmul.f32 %v2274, 0.70710677
    %v2307 = vmul.f32 %v2275, 0.70710677
    %v2308 = vmul.f32 %v2276, 0.70710677
    %v2309 = vmul.f32 %v2277, 0.70710677
    %v2310 = vmul.f32 %v2278, 0.70710677
    %v2311 = vmul.f32 %v2279, 0.70710677
    %v2312 = vmul.f32 %v2280, 0.70710677
    %v2313 = vmul.f32 %v2281, 0.70710677
    %v2314 = vmul.f32 %v2282, 0.70710677
    %v2315 = verf.f32.pop %v2299
    %v2316 = verf.f32.pop %v2300
    %v2317 = verf.f32.pop %v2301
    %v2318 = verf.f32.pop %v2302
    %v2319 = verf.f32.pop %v2303
    %v2320 = verf.f32.pop %v2304
    %v2321 = verf.f32.pop %v2305
    %v2322 = verf.f32.pop %v2306
    %v2323 = verf.f32.pop %v2307
    %v2324 = verf.f32.pop %v2308
    %v2325 = verf.f32.pop %v2309
    %v2326 = verf.f32.pop %v2310
    %v2327 = verf.f32.pop %v2311
    %v2328 = verf.f32.pop %v2312
    %v2329 = verf.f32.pop %v2313
    %v2330 = verf.f32.pop %v2314
    %v2331 = vadd.f32 %v2315, 1.0
    %v2332 = vadd.f32 %v2316, 1.0
    %v2333 = vadd.f32 %v2317, 1.0
    %v2334 = vadd.f32 %v2318, 1.0
    %v2335 = vadd.f32 %v2319, 1.0
    %v2336 = vadd.f32 %v2320, 1.0
    %v2337 = vadd.f32 %v2321, 1.0
    %v2338 = vadd.f32 %v2322, 1.0
    %v2339 = vadd.f32 %v2323, 1.0
    %v2340 = vadd.f32 %v2324, 1.0
    %v2341 = vadd.f32 %v2325, 1.0
    %v2342 = vadd.f32 %v2326, 1.0
    %v2343 = vadd.f32 %v2327, 1.0
    %v2344 = vadd.f32 %v2328, 1.0
    %v2345 = vadd.f32 %v2329, 1.0
    %v2346 = vadd.f32 %v2330, 1.0
    %v2347 = vmul.f32 %v2283, %v2331
    %v2348 = vmul.f32 %v2284, %v2332
    %v2349 = vmul.f32 %v2285, %v2333
    %v2350 = vmul.f32 %v2286, %v2334
    %v2351 = vmul.f32 %v2287, %v2335
    %v2352 = vmul.f32 %v2288, %v2336
    %v2353 = vmul.f32 %v2289, %v2337
    %v2354 = vmul.f32 %v2290, %v2338
    %v2355 = vmul.f32 %v2291, %v2339
    %v2356 = vmul.f32 %v2292, %v2340
    %v2357 = vmul.f32 %v2293, %v2341
    %v2358 = vmul.f32 %v2294, %v2342
    %v2359 = vmul.f32 %v2295, %v2343
    %v2360 = vmul.f32 %v2296, %v2344
    %v2361 = vmul.f32 %v2297, %v2345
    %v2362 = vmul.f32 %v2298, %v2346
    %v2363 = vld [vmem:[%s10] sm:$0x1]
    %v2364 = vld [vmem:[#allocation2] sm:$0x1]
    %2366 = vset.pattern.permute.xlu0 0
    %2367 = vperm.xlu0 %2366, %v2364
    %v2368 = vpop.permute.xlu0 %2367
    %v2370 = vlaneseq
    %v2371 = vshrl.u32 %v2370, 7
    %v2372 = vsub.s32 0, %v2371
    %v2373 = vrot.slane %v2368, %v2372
    %v2375 = vsel %vm420, %v2363, 0
    %v2378 = vsel %vm420, %v2347, 0
    %v2381 = vsel %vm420, %v2348, 0
    %v2384 = vsel %vm420, %v2349, 0
    %v2387 = vsel %vm420, %v2350, 0
    %v2390 = vsel %vm420, %v2351, 0
    %v2393 = vsel %vm420, %v2352, 0
    %v2396 = vsel %vm420, %v2353, 0
    %v2399 = vsel %vm420, %v2354, 0
    %v2402 = vsel %vm420, %v2355, 0
    %v2405 = vsel %vm420, %v2356, 0
    %v2408 = vsel %vm420, %v2357, 0
    %v2411 = vsel %vm420, %v2358, 0
    %v2414 = vsel %vm420, %v2359, 0
    %v2417 = vsel %vm420, %v2360, 0
    %v2420 = vsel %vm420, %v2361, 0
    %v2423 = vsel %vm420, %v2362, 0
    %2425 = vmatprep.subr.mxu0 0.0
    %2426 = vmatpush1.xpose.msra.mxu0 %v2378
    %2427 = vmatprep.subr.mxu0 0.0
    %2428 = vmatpush1.xpose.msra.mxu0 %v2381
    %2429 = vmatprep.subr.mxu0 0.0
    %2430 = vmatpush1.xpose.msra.mxu0 %v2384
    %2431 = vmatprep.subr.mxu0 0.0
    %2432 = vmatpush1.xpose.msra.mxu0 %v2387
    %2433 = vmatprep.subr.mxu0 0.0
    %2434 = vmatpush1.xpose.msra.mxu0 %v2390
    %2435 = vmatprep.subr.mxu0 0.0
    %2436 = vmatpush1.xpose.msra.mxu0 %v2393
    %2437 = vmatprep.subr.mxu0 0.0
    %2438 = vmatpush1.xpose.msra.mxu0 %v2396
    %2439 = vmatprep.subr.mxu0 0.0
    %2440 = vmatpush1.xpose.msra.mxu0 %v2399
    %2441 = vmatprep.subr.mxu0 0.0
    %2442 = vmatpush1.xpose.msra.mxu0 %v2402
    %2443 = vmatprep.subr.mxu0 0.0
    %2444 = vmatpush1.xpose.msra.mxu0 %v2405
    %2445 = vmatprep.subr.mxu0 0.0
    %2446 = vmatpush1.xpose.msra.mxu0 %v2408
    %2447 = vmatprep.subr.mxu0 0.0
    %2448 = vmatpush1.xpose.msra.mxu0 %v2411
    %2449 = vmatprep.subr.mxu0 0.0
    %2450 = vmatpush1.xpose.msra.mxu0 %v2414
    %2451 = vmatprep.subr.mxu0 0.0
    %2452 = vmatpush1.xpose.msra.mxu0 %v2417
    %2453 = vmatprep.subr.mxu0 0.0
    %2454 = vmatpush1.xpose.msra.mxu0 %v2420
    %2455 = vmatprep.subr.mxu0 0.0
    %2456 = vmatpush1.xpose.msra.mxu0 %v2423
    %2457 = vmatprep.subr.mxu0 0.0
    %2458 = vmatpush1.xpose.msra.mxu0 0.0
    %2459 = vmatprep.subr.mxu0 0.0
    %2460 = vmatpush1.xpose.msra.mxu0 0.0
    %2461 = vmatprep.subr.mxu0 0.0
    %2462 = vmatpush1.xpose.msra.mxu0 0.0
    %2463 = vmatprep.subr.mxu0 0.0
    %2464 = vmatpush1.xpose.msra.mxu0 0.0
    %2465 = vmatprep.subr.mxu0 0.0
    %2466 = vmatpush1.xpose.msra.mxu0 0.0
    %2467 = vmatprep.subr.mxu0 0.0
    %2468 = vmatpush1.xpose.msra.mxu0 0.0
    %2469 = vmatprep.subr.mxu0 0.0
    %2470 = vmatpush1.xpose.msra.mxu0 0.0
    %2471 = vmatprep.subr.mxu0 0.0
    %2472 = vmatpush1.xpose.msra.mxu0 0.0
    %2473 = vmatprep.subr.mxu0 0.0
    %2474 = vmatpush1.xpose.msra.mxu0 0.0
    %2475 = vmatprep.subr.mxu0 0.0
    %2476 = vmatpush1.xpose.msra.mxu0 0.0
    %2477 = vmatprep.subr.mxu0 0.0
    %2478 = vmatpush1.xpose.msra.mxu0 0.0
    %2479 = vmatprep.subr.mxu0 0.0
    %2480 = vmatpush1.xpose.msra.mxu0 0.0
    %2481 = vmatprep.subr.mxu0 0.0
    %2482 = vmatpush1.xpose.msra.mxu0 0.0
    %2483 = vmatprep.subr.mxu0 0.0
    %2484 = vmatpush1.xpose.msra.mxu0 0.0
    %2485 = vmatprep.subr.mxu0 0.0
    %2486 = vmatpush1.xpose.msra.mxu0 0.0
    %2487 = vmatprep.subr.mxu0 0.0
    %2488 = vmatpush1.xpose.msra.mxu0 0.0
    %2489 = vmatprep.mubr.f32.mxu0 0.0
    %2490 = vmatmul.mubr.f32.gmra.mrb[0].mxu0 %v2375
    %v2491 = vpop.f32.mrb[0].mxu0
    %v2492 = vadd.f32 %v2373, %v2491
    %v2493 = vpop.f32.mrb[0].mxu0
    %2494 = vdwg.mxu0
    %2495 = vst [vmem:[#allocation3] sm:$0x1] %v2492
    // Predicated region
    $region50: #{tpu_custom_call.1} parent=1 // pred_check
      _
    $region51: #{tpu_custom_call.1} parent=1 // pred_check_branch
      %2497 = sbr.rel (0) target = $region53
    $region52: #{tpu_custom_call.1} parent=1 // pred_region
      %s2499 = ssub.s32 16, 16
      %2500 = vsyncadd [#allocation4], %s2499
      %s2502 = sshll.u32 [#allocation3], 4
      %s2503 = int_to_ptr.vmem [resolvable:$true] %s2502
      %2505 = dma.vmem_to_hbm [thread:$0]  %s2503, 16, %s12, [#allocation4]
    $region53: #{tpu_custom_call.1} parent=1 // pred_fallthru
      _
    // Predicated region
    $region54: #{tpu_custom_call.1} parent=1 // pred_check
      _
    $region55: #{tpu_custom_call.1} parent=1 // pred_check_branch
      %2507 = sbr.rel (0) target = $region57
    $region56: #{tpu_custom_call.1} parent=1 // pred_region
      %2508 = dma.done [#allocation4], 16
    $region57: #{tpu_custom_call.1} parent=1 // pred_fallthru
      _
    %2509 = vsyncpa [#allocation4], 1

</llo_original>
